<compile_context>
chip_gen: v6e
topology: v6e:2x2x1
jax: 0.10.0
libtpu: 0.0.40
codegen_flags: <defaults>
</compile_context>

<pallas_src>
from functools import partial

import numpy as np
import jax
import jax.numpy as jnp
from jax import lax
from jax.experimental import pallas as pl
from jax.experimental.pallas import tpu as pltpu


# ----------------------------------------------------------------------------
# Host-side construction of the per-layer operators
# ----------------------------------------------------------------------------
def build_layer_ops(w_pt, scale, bias, kind, stride, Hin, Win):
    """Build the lane-banded W operator (BN scale folded), the f32 bias row and
    (for transposed convs) the 0/1 row-scatter operator R for one layer.

    w_pt : PyTorch-layout weight
           conv  : (Cout, Cin, 3, 3)
           convT : (Cin, Cout, 3, 3)
    Returns ((R | None, W, b), (Ho, Wo, Cout)) with
      R : (3, Ho, Hin)  bf16 0/1 row operator per ky tap (convT only)
      W : (3, Win*Cin, Wo*Cout) bf16 banded lane operator per ky tap
      b : (1, Wo*Cout)  f32 per-channel BN bias tiled over Wo
    """
    w = np.asarray(w_pt, dtype=np.float32)
    sc = np.asarray(scale, dtype=np.float32)
    bi = np.asarray(bias, dtype=np.float32)

    if kind == "conv":                       # Conv2d(k=3, pad=1, stride=s)
        Cout, Cin = w.shape[0], w.shape[1]
        w_hw = np.transpose(w, (2, 3, 1, 0))            # (ky, kx, Cin, Cout)
        Ho = (Hin + 2 - 3) // stride + 1
        Wo = (Win + 2 - 3) // stride + 1
    else:                                    # ConvTranspose2d(k=3, s=2, p=1, op=1)
        Cin, Cout = w.shape[0], w.shape[1]
        w_hw = np.transpose(w, (2, 3, 0, 1))            # (ky, kx, Cin, Cout)
        Ho, Wo = stride * Hin, stride * Win

    def src(o, k):
        """Input index feeding output index `o` through kernel tap `k` (or None)."""
        if kind == "conv":
            return stride * o + k - 1                    # pad = 1
        t = o + 1 - k                                    # o = stride*y - pad + k
        return t // 2 if t % 2 == 0 else None

    Wm = np.zeros((3, Win * Cin, Wo * Cout), np.float32)
    for kt in range(3):
        for j in range(Wo):
            for kx in range(3):
                x = src(j, kx)
                if x is not None and 0 <= x < Win:
                    Wm[kt, x * Cin:(x + 1) * Cin, j * Cout:(j + 1) * Cout] += w_hw[kt, kx]

    # Fold BatchNorm scale into the weight columns; keep only the bias add.
    Wm = Wm * np.tile(sc, Wo)[None, None, :]
    brow = np.tile(bi, Wo)[None, :]

    R = None
    if kind == "convT":
        R_np = np.zeros((3, Ho, Hin), np.float32)
        for kt in range(3):
            for i in range(Ho):
                y = src(i, kt)
                if y is not None and 0 <= y < Hin:
                    R_np[kt, i, y] = 1.0
            R = jnp.asarray(R_np, jnp.bfloat16)          # exact 0/1 in bf16

    return ((R, jnp.asarray(Wm, jnp.bfloat16), jnp.asarray(brow, jnp.float32)),
            (Ho, Wo, Cout))


def init_model(key, inplanes, H, W):
    """Deterministic parameters (PyTorch layout) + precomputed tap operators."""
    c, c2 = inplanes, 2 * inplanes
    keys = jax.random.split(key, 30)
    kit = iter(keys)
    eps = 1e-5

    def bn_params(cout):
        gamma = 1.0 + 0.1 * jax.random.normal(next(kit), (cout,), jnp.float32)
        beta = 0.1 * jax.random.normal(next(kit), (cout,), jnp.float32)
        mean = 0.1 * jax.random.normal(next(kit), (cout,), jnp.float32)
        var = jax.random.uniform(next(kit), (cout,), jnp.float32, 0.5, 1.5)
        scale = gamma / jnp.sqrt(var + eps)
        bias = beta - mean * scale
        return scale, bias

    def conv_w(cout, cin):          # PyTorch Conv2d weight: (Cout, Cin, kh, kw)
        return 0.1 * jax.random.normal(next(kit), (cout, cin, 3, 3), jnp.float32)

    def convT_w(cin, cout):         # PyTorch ConvTranspose2d weight: (Cin, Cout, kh, kw)
        return 0.1 * jax.random.normal(next(kit), (cin, cout, 3, 3), jnp.float32)

    raw = {
        "conv1": (conv_w(c2, c),) + bn_params(c2),
        "conv2": (conv_w(c2, c2),) + bn_params(c2),
        "conv3": (conv_w(c2, c2),) + bn_params(c2),
        "conv4": (conv_w(c2, c2),) + bn_params(c2),
        "conv5": (convT_w(c2, c2),) + bn_params(c2),
        "conv6": (convT_w(c2, c),) + bn_params(c),
    }

    specs = [("conv1", "conv", 2), ("conv2", "conv", 1), ("conv3", "conv", 2),
             ("conv4", "conv", 1), ("conv5", "convT", 2), ("conv6", "convT", 2)]

    taps, meta = [], []
    h, w = H, W
    for name, kind, stride in specs:
        w_pt, scale, bias = raw[name]
        ops, m = build_layer_ops(w_pt, scale, bias, kind, stride, h, w)
        taps.append(ops)
        meta.append(m)
        h, w = m[0], m[1]
    return raw, tuple(taps), tuple(meta)


# ----------------------------------------------------------------------------
# In-kernel building blocks
# ----------------------------------------------------------------------------
def _conv3x3_rows(src_ref, w_ref, b_ref, ho, stride):
    """Forward 3x3 conv:  out = sum_ky rows_ky @ W_ky + bias.

    rows_ky is a (strided) sublane slice of the row-padded activation — the 0/1
    row operator never touches the MXU.  Operands are cast to bf16 for the MXU;
    accumulation and the bias epilogue stay f32.
    """
    acc = None
    for t in range(3):
        if stride == 1:
            rows = src_ref[pl.ds(t, ho), :]
        else:
            rows = src_ref[pl.ds(t, ho, stride=stride), :]
        part = jnp.dot(rows.astype(jnp.bfloat16), w_ref[t],
                       preferred_element_type=jnp.float32)
        acc = part if acc is None else acc + part
    return acc + b_ref[...]


def _tconv3x3(a_val, r_ref, w_ref, b_ref):
    """Transposed 3x3 conv, reassociated as  out = sum_ky R_ky @ (A @ W_ky) + b.

    The wide banded matmul runs over the small input rows (Hin), not the 2x
    upsampled output rows; R_ky rows have at most one nonzero (pure scatter).
    """
    a16 = a_val.astype(jnp.bfloat16)
    acc = None
    for t in range(3):
        bt = jnp.dot(a16, w_ref[t], preferred_element_type=jnp.float32)
        part = jnp.dot(r_ref[t], bt.astype(jnp.bfloat16),
                       preferred_element_type=jnp.float32)
        acc = part if acc is None else acc + part
    return acc + b_ref[...]


def _store_row_padded(pad_ref, val, h):
    """Write `val` (h rows) into rows [1, h] of pad_ref; zero rows 0 and h+1."""
    zero = jnp.zeros((1, pad_ref.shape[1]), jnp.float32)
    pad_ref[0:1, :] = zero
    pad_ref[h + 1:h + 2, :] = zero
    pad_ref[1:h + 1, :] = val


def _make_kernel(hos, has_presqu, has_postsqu):
    Ho1, Ho2, Ho3, Ho4, _Ho5, _Ho6 = hos

    def kernel(*refs):
        it = iter(refs)
        x_ref = next(it)                                   # (H+2, W*Cin) padded rows
        w1, b1 = next(it), next(it)
        w2, b2 = next(it), next(it)
        w3, b3 = next(it), next(it)
        w4, b4 = next(it), next(it)
        r5, w5, b5 = next(it), next(it), next(it)
        r6, w6, b6 = next(it), next(it), next(it)
        presqu_ref = next(it) if has_presqu else None
        postsqu_ref = next(it) if has_postsqu else None
        out_ref, pre_ref, post_ref = next(it), next(it), next(it)
        a1_pad, pre_pad, a3_pad = next(it), next(it), next(it)

        # conv1 (+BN) + ReLU : 3x3, stride 2
        a1 = jnp.maximum(_conv3x3_rows(x_ref, w1, b1, Ho1, 2), 0.0)
        _store_row_padded(a1_pad, a1, Ho1)

        # conv2 (+BN) (+postsqu) + ReLU : 3x3, stride 1
        y2 = _conv3x3_rows(a1_pad, w2, b2, Ho2, 1)
        if postsqu_ref is not None:
            y2 = y2 + postsqu_ref[...]
        pre = jnp.maximum(y2, 0.0)
        pre_ref[...] = pre
        _store_row_padded(pre_pad, pre, Ho2)

        # conv3 (+BN) + ReLU : 3x3, stride 2
        a3 = jnp.maximum(_conv3x3_rows(pre_pad, w3, b3, Ho3, 2), 0.0)
        _store_row_padded(a3_pad, a3, Ho3)

        # conv4 (+BN) + ReLU : 3x3, stride 1
        a4 = jnp.maximum(_conv3x3_rows(a3_pad, w4, b4, Ho4, 1), 0.0)

        # conv5 (transposed, +BN) + skip + ReLU
        y5 = _tconv3x3(a4, r5, w5, b5)
        y5 = y5 + (presqu_ref[...] if presqu_ref is not None else pre)
        post = jnp.maximum(y5, 0.0)
        post_ref[...] = post

        # conv6 (transposed, +BN), no activation
        out_ref[...] = _tconv3x3(post, r6, w6, b6)

    return kernel


# ----------------------------------------------------------------------------
# Wrapper: grid over batch, weights resident, activations/outputs streamed
# ----------------------------------------------------------------------------
def _const_spec(shape):
    zeros = (0,) * len(shape)
    return pl.BlockSpec(tuple(shape), lambda n, _z=zeros: _z)


def _batch_spec(tail):
    z = (0,) * len(tail)
    return pl.BlockSpec((None,) + tuple(tail), lambda n, _z=z: (n,) + _z)


@partial(jax.jit, static_argnames=("meta",))
def hourglass2d_forward(x_nhwc, taps, *, meta, presqu=None, postsqu=None):
    N, H, W, Cin = x_nhwc.shape

    # Row-pad the input (pad=1 top/bottom) so every conv row tap is a plain
    # (strided) sublane slice inside the kernel; lane-dense (H+2, W*Cin) slabs.
    x_pad = jnp.pad(x_nhwc, ((0, 0), (1, 1), (0, 0), (0, 0)))
    x_pad = x_pad.reshape(N, H + 2, W * Cin)

    args, in_specs = [x_pad], [_batch_spec((H + 2, W * Cin))]
    streamed = [x_pad]
    for (R, Wm, brow) in taps:
        if R is not None:
            args.append(R)
            in_specs.append(_const_spec(R.shape))
        args.append(Wm)
        in_specs.append(_const_spec(Wm.shape))
        args.append(brow)
        in_specs.append(_const_spec(brow.shape))

    (Ho1, Wo1, C1) = meta[0]
    (Ho2, Wo2, C2) = meta[1]
    (Ho3, Wo3, C3) = meta[2]
    (Ho5, Wo5, C5) = meta[4]
    (Ho6, Wo6, C6) = meta[5]

    if presqu is not None:
        p5 = presqu.reshape(N, Ho5, Wo5 * C5)
        args.append(p5)
        in_specs.append(_batch_spec((Ho5, Wo5 * C5)))
        streamed.append(p5)
    if postsqu is not None:
        p2 = postsqu.reshape(N, Ho2, Wo2 * C2)
        args.append(p2)
        in_specs.append(_batch_spec((Ho2, Wo2 * C2)))
        streamed.append(p2)

    out_shapes = (
        jax.ShapeDtypeStruct((N, Ho6, Wo6 * C6), jnp.float32),   # out
        jax.ShapeDtypeStruct((N, Ho2, Wo2 * C2), jnp.float32),   # pre
        jax.ShapeDtypeStruct((N, Ho5, Wo5 * C5), jnp.float32),   # post
    )
    out_specs = (_batch_spec((Ho6, Wo6 * C6)),
                 _batch_spec((Ho2, Wo2 * C2)),
                 _batch_spec((Ho5, Wo5 * C5)))

    scratch_dims = [(Ho1 + 2, Wo1 * C1),    # a1, row-padded
                    (Ho2 + 2, Wo2 * C2),    # pre, row-padded
                    (Ho3 + 2, Wo3 * C3)]    # a3, row-padded
    scratch_shapes = [pltpu.VMEM(s, jnp.float32) for s in scratch_dims]

    # VMEM budget: resident weights + double-buffered per-batch slabs + scratch.
    tap_bytes = 2 * sum(int(a.size) * a.dtype.itemsize
                        for lyr in taps for a in lyr if a is not None)
    stream_bytes = 2 * sum(int(np.prod(a.shape[1:])) * a.dtype.itemsize
                           for a in streamed)
    out_bytes = 2 * sum(int(np.prod(s.shape[1:])) * 4 for s in out_shapes)
    scratch_bytes = sum(4 * s[0] * s[1] for s in scratch_dims)
    vmem_limit = int(min(60 << 20,
                         max(32 << 20,
                             2 * (tap_bytes + stream_bytes + out_bytes
                                  + scratch_bytes) + (2 << 20))))

    hos = tuple(m[0] for m in meta)
    kernel = _make_kernel(hos, presqu is not None, postsqu is not None)

    out3d, pre3d, post3d = pl.pallas_call(
        kernel,
        grid=(N,),
        in_specs=in_specs,
        out_specs=out_specs,
        out_shape=out_shapes,
        scratch_shapes=scratch_shapes,
        compiler_params=pltpu.CompilerParams(
            dimension_semantics=("parallel",),
            vmem_limit_bytes=vmem_limit),
    )(*args)

    out = out3d.reshape(N, Ho6, Wo6, C6)
    pre = pre3d.reshape(N, Ho2, Wo2, C2)
    post = post3d.reshape(N, Ho5, Wo5, C5)
    return out, pre, post


# ----------------------------------------------------------------------------
# Pure-lax reference (built directly from the raw PyTorch-layout parameters)
# ----------------------------------------------------------------------------
def _ref_conv(x, w_pt, scale, bias, stride):
    w_hwio = jnp.transpose(w_pt, (2, 3, 1, 0))
    y = lax.conv_general_dilated(x, w_hwio, (stride, stride), ((1, 1), (1, 1)),
                                 dimension_numbers=("NHWC", "HWIO", "NHWC"),
                                 precision=lax.Precision.HIGHEST)
    return y * scale + bias


def _ref_convT(x, w_pt, scale, bias):
    w_hwio = jnp.transpose(w_pt, (2, 3, 0, 1))[::-1, ::-1, :, :]
    y = lax.conv_general_dilated(x, w_hwio, (1, 1), ((1, 2), (1, 2)),
                                 lhs_dilation=(2, 2),
                                 dimension_numbers=("NHWC", "HWIO", "NHWC"),
                                 precision=lax.Precision.HIGHEST)
    return y * scale + bias


def _ref_forward(x, raw, presqu=None, postsqu=None):
    out = jax.nn.relu(_ref_conv(x, *raw["conv1"], stride=2))
    pre = _ref_conv(out, *raw["conv2"], stride=1)
    pre = jax.nn.relu(pre + postsqu) if postsqu is not None else jax.nn.relu(pre)
    out = jax.nn.relu(_ref_conv(pre, *raw["conv3"], stride=2))
    out = jax.nn.relu(_ref_conv(out, *raw["conv4"], stride=1))
    p5 = _ref_convT(out, *raw["conv5"])
    post = jax.nn.relu(p5 + (presqu if presqu is not None else pre))
    out = _ref_convT(post, *raw["conv6"])
    return out, pre, post


# ----------------------------------------------------------------------------
if __name__ == "__main__":
    key = jax.random.PRNGKey(0)
    k_x, k_p, k_pre, k_post = jax.random.split(key, 4)

    inplanes, N, H, W = 4, 2, 16, 16
    # NHWC activations; equivalent to the PyTorch NCHW input (2, 4, 16, 16).
    x = jax.random.normal(k_x, (N, H, W, inplanes), jnp.float32)

    raw, taps, meta = init_model(k_p, inplanes, H, W)

    # bf16 MXU operands vs f32 lax reference -> loosened tolerance.
    ATOL, RTOL = 1e-1, 5e-2

    # --- path 1: presqu = postsqu = None -------------------------------------
    out, pre, post = hourglass2d_forward(x, taps, meta=meta)
    (out, pre, post) = jax.block_until_ready((out, pre, post))
    assert out.shape == (N, H, W, inplanes)
    assert pre.shape == (N, H // 2, W // 2, 2 * inplanes)
    assert post.shape == (N, H // 2, W // 2, 2 * inplanes)

    r_out, r_pre, r_post = _ref_forward(x, raw)
    for got, want in ((out, r_out), (pre, r_pre), (post, r_post)):
        if not jnp.allclose(got, want, atol=ATOL, rtol=RTOL):
            raise AssertionError("Pallas output mismatch vs lax reference (no skips)")

    # --- path 2: external presqu / postsqu skip inputs -----------------------
    presqu = jax.random.normal(k_pre, (N, H // 2, W // 2, 2 * inplanes), jnp.float32)
    postsqu = jax.random.normal(k_post, (N, H // 2, W // 2, 2 * inplanes), jnp.float32)
    out2, pre2, post2 = hourglass2d_forward(x, taps, meta=meta,
                                            presqu=presqu, postsqu=postsqu)
    (out2, pre2, post2) = jax.block_until_ready((out2, pre2, post2))
    r_out2, r_pre2, r_post2 = _ref_forward(x, raw, presqu=presqu, postsqu=postsqu)
    for got, want in ((out2, r_out2), (pre2, r_pre2), (post2, r_post2)):
        if not jnp.allclose(got, want, atol=ATOL, rtol=RTOL):
            raise AssertionError("Pallas output mismatch vs lax reference (with skips)")

    print("KERNEL_OK")
</pallas_src>

<mosaic_0001>
module attributes {stable_mosaic.version = 11 : i64} {
  func.func @kernel(%arg0: i32, %arg1: memref<1x18x64xf32, #tpu.memory_space<vmem>>, %arg2: memref<3x64x64xbf16, #tpu.memory_space<vmem>>, %arg3: memref<1x64xf32, #tpu.memory_space<vmem>>, %arg4: memref<3x64x64xbf16, #tpu.memory_space<vmem>>, %arg5: memref<1x64xf32, #tpu.memory_space<vmem>>, %arg6: memref<3x64x32xbf16, #tpu.memory_space<vmem>>, %arg7: memref<1x32xf32, #tpu.memory_space<vmem>>, %arg8: memref<3x32x32xbf16, #tpu.memory_space<vmem>>, %arg9: memref<1x32xf32, #tpu.memory_space<vmem>>, %arg10: memref<3x8x4xbf16, #tpu.memory_space<vmem>>, %arg11: memref<3x32x64xbf16, #tpu.memory_space<vmem>>, %arg12: memref<1x64xf32, #tpu.memory_space<vmem>>, %arg13: memref<3x16x8xbf16, #tpu.memory_space<vmem>>, %arg14: memref<3x64x64xbf16, #tpu.memory_space<vmem>>, %arg15: memref<1x64xf32, #tpu.memory_space<vmem>>, %arg16: memref<1x16x64xf32, #tpu.memory_space<vmem>>, %arg17: memref<1x8x64xf32, #tpu.memory_space<vmem>>, %arg18: memref<1x8x64xf32, #tpu.memory_space<vmem>>, %arg19: memref<10x64xf32, #tpu.memory_space<vmem>>, %arg20: memref<10x64xf32, #tpu.memory_space<vmem>>, %arg21: memref<6x32xf32, #tpu.memory_space<vmem>>) attributes {dimension_semantics = [#tpu.dimension_semantics<parallel>], iteration_bounds = array<i64: 2>, scalar_prefetch = 0 : i64, scratch_operands = 3 : i64, tpu.core_type = #tpu.core_type<tc>, window_params = [{transform_indices = @transform_0, window_bounds = array<i64: 1, 18, 64>}, {pipeline_mode = #tpu.pipeline_mode<synchronous>, transform_indices = @transform_1, window_bounds = array<i64: 3, 64, 64>}, {pipeline_mode = #tpu.pipeline_mode<synchronous>, transform_indices = @transform_2, window_bounds = array<i64: 1, 64>}, {pipeline_mode = #tpu.pipeline_mode<synchronous>, transform_indices = @transform_3, window_bounds = array<i64: 3, 64, 64>}, {pipeline_mode = #tpu.pipeline_mode<synchronous>, transform_indices = @transform_4, window_bounds = array<i64: 1, 64>}, {pipeline_mode = #tpu.pipeline_mode<synchronous>, transform_indices = @transform_5, window_bounds = array<i64: 3, 64, 32>}, {pipeline_mode = #tpu.pipeline_mode<synchronous>, transform_indices = @transform_6, window_bounds = array<i64: 1, 32>}, {pipeline_mode = #tpu.pipeline_mode<synchronous>, transform_indices = @transform_7, window_bounds = array<i64: 3, 32, 32>}, {pipeline_mode = #tpu.pipeline_mode<synchronous>, transform_indices = @transform_8, window_bounds = array<i64: 1, 32>}, {pipeline_mode = #tpu.pipeline_mode<synchronous>, transform_indices = @transform_9, window_bounds = array<i64: 3, 8, 4>}, {pipeline_mode = #tpu.pipeline_mode<synchronous>, transform_indices = @transform_10, window_bounds = array<i64: 3, 32, 64>}, {pipeline_mode = #tpu.pipeline_mode<synchronous>, transform_indices = @transform_11, window_bounds = array<i64: 1, 64>}, {pipeline_mode = #tpu.pipeline_mode<synchronous>, transform_indices = @transform_12, window_bounds = array<i64: 3, 16, 8>}, {pipeline_mode = #tpu.pipeline_mode<synchronous>, transform_indices = @transform_13, window_bounds = array<i64: 3, 64, 64>}, {pipeline_mode = #tpu.pipeline_mode<synchronous>, transform_indices = @transform_14, window_bounds = array<i64: 1, 64>}, {transform_indices = @transform_15, window_bounds = array<i64: 1, 16, 64>}, {transform_indices = @transform_16, window_bounds = array<i64: 1, 8, 64>}, {transform_indices = @transform_17, window_bounds = array<i64: 1, 8, 64>}]} {
    %c0 = arith.constant 0 : index
    %c0_0 = arith.constant 0 : index
    %c0_1 = arith.constant 0 : index
    %0 = tpu.strided_load %arg1[%c0, %c0_0, %c0_1] {strides = array<i32: 1, 2, 1>} : memref<1x18x64xf32, #tpu.memory_space<vmem>>, vector<1x8x64xf32>
    %1 = vector.shape_cast %0 : vector<1x8x64xf32> to vector<8x64xf32>
    %2 = arith.truncf %1 : vector<8x64xf32> to vector<8x64xbf16>
    %c0_2 = arith.constant 0 : index
    %c0_3 = arith.constant 0 : index
    %c0_4 = arith.constant 0 : index
    %3 = vector.load %arg2[%c0_2, %c0_3, %c0_4] : memref<3x64x64xbf16, #tpu.memory_space<vmem>>, vector<1x64x64xbf16>
    %4 = vector.shape_cast %3 : vector<1x64x64xbf16> to vector<64x64xbf16>
    %cst = arith.constant dense<0.000000e+00> : vector<8x64xf32>
    %5 = tpu.matmul %2, %4, %cst {dimension_numbers = #tpu.dot_dimension_numbers<[1], [0], [0], [1], [0, 0, 1, 1], [], []>} : vector<8x64xbf16>, vector<64x64xbf16>, vector<8x64xf32> -> vector<8x64xf32>
    %c0_5 = arith.constant 0 : index
    %c1 = arith.constant 1 : index
    %c0_6 = arith.constant 0 : index
    %6 = tpu.strided_load %arg1[%c0_5, %c1, %c0_6] {strides = array<i32: 1, 2, 1>} : memref<1x18x64xf32, #tpu.memory_space<vmem>>, vector<1x8x64xf32>
    %7 = vector.shape_cast %6 : vector<1x8x64xf32> to vector<8x64xf32>
    %8 = arith.truncf %7 : vector<8x64xf32> to vector<8x64xbf16>
    %c1_7 = arith.constant 1 : index
    %c0_8 = arith.constant 0 : index
    %c0_9 = arith.constant 0 : index
    %9 = vector.load %arg2[%c1_7, %c0_8, %c0_9] : memref<3x64x64xbf16, #tpu.memory_space<vmem>>, vector<1x64x64xbf16>
    %10 = vector.shape_cast %9 : vector<1x64x64xbf16> to vector<64x64xbf16>
    %cst_10 = arith.constant dense<0.000000e+00> : vector<8x64xf32>
    %11 = tpu.matmul %8, %10, %cst_10 {dimension_numbers = #tpu.dot_dimension_numbers<[1], [0], [0], [1], [0, 0, 1, 1], [], []>} : vector<8x64xbf16>, vector<64x64xbf16>, vector<8x64xf32> -> vector<8x64xf32>
    %12 = arith.addf %5, %11 : vector<8x64xf32>
    %c0_11 = arith.constant 0 : index
    %c2 = arith.constant 2 : index
    %c0_12 = arith.constant 0 : index
    %13 = tpu.strided_load %arg1[%c0_11, %c2, %c0_12] {strides = array<i32: 1, 2, 1>} : memref<1x18x64xf32, #tpu.memory_space<vmem>>, vector<1x8x64xf32>
    %14 = vector.shape_cast %13 : vector<1x8x64xf32> to vector<8x64xf32>
    %15 = arith.truncf %14 : vector<8x64xf32> to vector<8x64xbf16>
    %c2_13 = arith.constant 2 : index
    %c0_14 = arith.constant 0 : index
    %c0_15 = arith.constant 0 : index
    %16 = vector.load %arg2[%c2_13, %c0_14, %c0_15] : memref<3x64x64xbf16, #tpu.memory_space<vmem>>, vector<1x64x64xbf16>
    %17 = vector.shape_cast %16 : vector<1x64x64xbf16> to vector<64x64xbf16>
    %cst_16 = arith.constant dense<0.000000e+00> : vector<8x64xf32>
    %18 = tpu.matmul %15, %17, %cst_16 {dimension_numbers = #tpu.dot_dimension_numbers<[1], [0], [0], [1], [0, 0, 1, 1], [], []>} : vector<8x64xbf16>, vector<64x64xbf16>, vector<8x64xf32> -> vector<8x64xf32>
    %19 = arith.addf %12, %18 : vector<8x64xf32>
    %c0_17 = arith.constant 0 : index
    %c0_18 = arith.constant 0 : index
    %20 = vector.load %arg3[%c0_17, %c0_18] : memref<1x64xf32, #tpu.memory_space<vmem>>, vector<1x64xf32>
    %21 = vector.broadcast %20 : vector<1x64xf32> to vector<8x64xf32>
    %22 = arith.addf %19, %21 : vector<8x64xf32>
    %cst_19 = arith.constant 0.000000e+00 : f32
    %23 = vector.broadcast %cst_19 : f32 to vector<8x64xf32>
    %24 = arith.maximumf %22, %23 : vector<8x64xf32>
    %cst_20 = arith.constant 0.000000e+00 : f32
    %25 = vector.broadcast %cst_20 : f32 to vector<1x64xf32>
    %c0_21 = arith.constant 0 : index
    %c0_22 = arith.constant 0 : index
    %26 = vector.load %arg19[%c0_21, %c0_22] : memref<10x64xf32, #tpu.memory_space<vmem>>, vector<1x64xf32>
    tpu.vector_store %arg19[%c0_21, %c0_22], %25 {strides = array<i32>} : memref<10x64xf32, #tpu.memory_space<vmem>>, vector<1x64xf32>,
    %c9 = arith.constant 9 : index
    %c0_23 = arith.constant 0 : index
    %27 = vector.load %arg19[%c9, %c0_23] : memref<10x64xf32, #tpu.memory_space<vmem>>, vector<1x64xf32>
    tpu.vector_store %arg19[%c9, %c0_23], %25 {strides = array<i32>} : memref<10x64xf32, #tpu.memory_space<vmem>>, vector<1x64xf32>,
    %c1_24 = arith.constant 1 : index
    %c0_25 = arith.constant 0 : index
    %28 = vector.load %arg19[%c1_24, %c0_25] : memref<10x64xf32, #tpu.memory_space<vmem>>, vector<8x64xf32>
    tpu.vector_store %arg19[%c1_24, %c0_25], %24 {strides = array<i32>} : memref<10x64xf32, #tpu.memory_space<vmem>>, vector<8x64xf32>,
    %c0_26 = arith.constant 0 : index
    %c0_27 = arith.constant 0 : index
    %29 = vector.load %arg19[%c0_26, %c0_27] : memref<10x64xf32, #tpu.memory_space<vmem>>, vector<8x64xf32>
    %30 = arith.truncf %29 : vector<8x64xf32> to vector<8x64xbf16>
    %c0_28 = arith.constant 0 : index
    %c0_29 = arith.constant 0 : index
    %c0_30 = arith.constant 0 : index
    %31 = vector.load %arg4[%c0_28, %c0_29, %c0_30] : memref<3x64x64xbf16, #tpu.memory_space<vmem>>, vector<1x64x64xbf16>
    %32 = vector.shape_cast %31 : vector<1x64x64xbf16> to vector<64x64xbf16>
    %cst_31 = arith.constant dense<0.000000e+00> : vector<8x64xf32>
    %33 = tpu.matmul %30, %32, %cst_31 {dimension_numbers = #tpu.dot_dimension_numbers<[1], [0], [0], [1], [0, 0, 1, 1], [], []>} : vector<8x64xbf16>, vector<64x64xbf16>, vector<8x64xf32> -> vector<8x64xf32>
    %c1_32 = arith.constant 1 : index
    %c0_33 = arith.constant 0 : index
    %34 = vector.load %arg19[%c1_32, %c0_33] : memref<10x64xf32, #tpu.memory_space<vmem>>, vector<8x64xf32>
    %35 = arith.truncf %34 : vector<8x64xf32> to vector<8x64xbf16>
    %c1_34 = arith.constant 1 : index
    %c0_35 = arith.constant 0 : index
    %c0_36 = arith.constant 0 : index
    %36 = vector.load %arg4[%c1_34, %c0_35, %c0_36] : memref<3x64x64xbf16, #tpu.memory_space<vmem>>, vector<1x64x64xbf16>
    %37 = vector.shape_cast %36 : vector<1x64x64xbf16> to vector<64x64xbf16>
    %cst_37 = arith.constant dense<0.000000e+00> : vector<8x64xf32>
    %38 = tpu.matmul %35, %37, %cst_37 {dimension_numbers = #tpu.dot_dimension_numbers<[1], [0], [0], [1], [0, 0, 1, 1], [], []>} : vector<8x64xbf16>, vector<64x64xbf16>, vector<8x64xf32> -> vector<8x64xf32>
    %39 = arith.addf %33, %38 : vector<8x64xf32>
    %c2_38 = arith.constant 2 : index
    %c0_39 = arith.constant 0 : index
    %40 = vector.load %arg19[%c2_38, %c0_39] : memref<10x64xf32, #tpu.memory_space<vmem>>, vector<8x64xf32>
    %41 = arith.truncf %40 : vector<8x64xf32> to vector<8x64xbf16>
    %c2_40 = arith.constant 2 : index
    %c0_41 = arith.constant 0 : index
    %c0_42 = arith.constant 0 : index
    %42 = vector.load %arg4[%c2_40, %c0_41, %c0_42] : memref<3x64x64xbf16, #tpu.memory_space<vmem>>, vector<1x64x64xbf16>
    %43 = vector.shape_cast %42 : vector<1x64x64xbf16> to vector<64x64xbf16>
    %cst_43 = arith.constant dense<0.000000e+00> : vector<8x64xf32>
    %44 = tpu.matmul %41, %43, %cst_43 {dimension_numbers = #tpu.dot_dimension_numbers<[1], [0], [0], [1], [0, 0, 1, 1], [], []>} : vector<8x64xbf16>, vector<64x64xbf16>, vector<8x64xf32> -> vector<8x64xf32>
    %45 = arith.addf %39, %44 : vector<8x64xf32>
    %c0_44 = arith.constant 0 : index
    %c0_45 = arith.constant 0 : index
    %46 = vector.load %arg5[%c0_44, %c0_45] : memref<1x64xf32, #tpu.memory_space<vmem>>, vector<1x64xf32>
    %47 = vector.broadcast %46 : vector<1x64xf32> to vector<8x64xf32>
    %48 = arith.addf %45, %47 : vector<8x64xf32>
    %cst_46 = arith.constant 0.000000e+00 : f32
    %49 = vector.broadcast %cst_46 : f32 to vector<8x64xf32>
    %50 = arith.maximumf %48, %49 : vector<8x64xf32>
    %c0_47 = arith.constant 0 : index
    %c0_48 = arith.constant 0 : index
    %c0_49 = arith.constant 0 : index
    %51 = vector.load %arg17[%c0_47, %c0_48, %c0_49] : memref<1x8x64xf32, #tpu.memory_space<vmem>>, vector<1x8x64xf32>
    %52 = vector.shape_cast %51 : vector<1x8x64xf32> to vector<8x64xf32>
    %53 = vector.shape_cast %50 : vector<8x64xf32> to vector<1x8x64xf32>
    tpu.vector_store %arg17[%c0_47, %c0_48, %c0_49], %53 {strides = array<i32>} : memref<1x8x64xf32, #tpu.memory_space<vmem>>, vector<1x8x64xf32>,
    %cst_50 = arith.constant 0.000000e+00 : f32
    %54 = vector.broadcast %cst_50 : f32 to vector<1x64xf32>
    %c0_51 = arith.constant 0 : index
    %c0_52 = arith.constant 0 : index
    %55 = vector.load %arg20[%c0_51, %c0_52] : memref<10x64xf32, #tpu.memory_space<vmem>>, vector<1x64xf32>
    tpu.vector_store %arg20[%c0_51, %c0_52], %54 {strides = array<i32>} : memref<10x64xf32, #tpu.memory_space<vmem>>, vector<1x64xf32>,
    %c9_53 = arith.constant 9 : index
    %c0_54 = arith.constant 0 : index
    %56 = vector.load %arg20[%c9_53, %c0_54] : memref<10x64xf32, #tpu.memory_space<vmem>>, vector<1x64xf32>
    tpu.vector_store %arg20[%c9_53, %c0_54], %54 {strides = array<i32>} : memref<10x64xf32, #tpu.memory_space<vmem>>, vector<1x64xf32>,
    %c1_55 = arith.constant 1 : index
    %c0_56 = arith.constant 0 : index
    %57 = vector.load %arg20[%c1_55, %c0_56] : memref<10x64xf32, #tpu.memory_space<vmem>>, vector<8x64xf32>
    tpu.vector_store %arg20[%c1_55, %c0_56], %50 {strides = array<i32>} : memref<10x64xf32, #tpu.memory_space<vmem>>, vector<8x64xf32>,
    %c0_57 = arith.constant 0 : index
    %c0_58 = arith.constant 0 : index
    %58 = tpu.strided_load %arg20[%c0_57, %c0_58] {strides = array<i32: 2, 1>} : memref<10x64xf32, #tpu.memory_space<vmem>>, vector<4x64xf32>
    %59 = arith.truncf %58 : vector<4x64xf32> to vector<4x64xbf16>
    %c0_59 = arith.constant 0 : index
    %c0_60 = arith.constant 0 : index
    %c0_61 = arith.constant 0 : index
    %60 = vector.load %arg6[%c0_59, %c0_60, %c0_61] : memref<3x64x32xbf16, #tpu.memory_space<vmem>>, vector<1x64x32xbf16>
    %61 = vector.shape_cast %60 : vector<1x64x32xbf16> to vector<64x32xbf16>
    %cst_62 = arith.constant dense<0.000000e+00> : vector<4x32xf32>
    %62 = tpu.matmul %59, %61, %cst_62 {dimension_numbers = #tpu.dot_dimension_numbers<[1], [0], [0], [1], [0, 0, 1, 1], [], []>} : vector<4x64xbf16>, vector<64x32xbf16>, vector<4x32xf32> -> vector<4x32xf32>
    %c1_63 = arith.constant 1 : index
    %c0_64 = arith.constant 0 : index
    %63 = tpu.strided_load %arg20[%c1_63, %c0_64] {strides = array<i32: 2, 1>} : memref<10x64xf32, #tpu.memory_space<vmem>>, vector<4x64xf32>
    %64 = arith.truncf %63 : vector<4x64xf32> to vector<4x64xbf16>
    %c1_65 = arith.constant 1 : index
    %c0_66 = arith.constant 0 : index
    %c0_67 = arith.constant 0 : index
    %65 = vector.load %arg6[%c1_65, %c0_66, %c0_67] : memref<3x64x32xbf16, #tpu.memory_space<vmem>>, vector<1x64x32xbf16>
    %66 = vector.shape_cast %65 : vector<1x64x32xbf16> to vector<64x32xbf16>
    %cst_68 = arith.constant dense<0.000000e+00> : vector<4x32xf32>
    %67 = tpu.matmul %64, %66, %cst_68 {dimension_numbers = #tpu.dot_dimension_numbers<[1], [0], [0], [1], [0, 0, 1, 1], [], []>} : vector<4x64xbf16>, vector<64x32xbf16>, vector<4x32xf32> -> vector<4x32xf32>
    %68 = arith.addf %62, %67 : vector<4x32xf32>
    %c2_69 = arith.constant 2 : index
    %c0_70 = arith.constant 0 : index
    %69 = tpu.strided_load %arg20[%c2_69, %c0_70] {strides = array<i32: 2, 1>} : memref<10x64xf32, #tpu.memory_space<vmem>>, vector<4x64xf32>
    %70 = arith.truncf %69 : vector<4x64xf32> to vector<4x64xbf16>
    %c2_71 = arith.constant 2 : index
    %c0_72 = arith.constant 0 : index
    %c0_73 = arith.constant 0 : index
    %71 = vector.load %arg6[%c2_71, %c0_72, %c0_73] : memref<3x64x32xbf16, #tpu.memory_space<vmem>>, vector<1x64x32xbf16>
    %72 = vector.shape_cast %71 : vector<1x64x32xbf16> to vector<64x32xbf16>
    %cst_74 = arith.constant dense<0.000000e+00> : vector<4x32xf32>
    %73 = tpu.matmul %70, %72, %cst_74 {dimension_numbers = #tpu.dot_dimension_numbers<[1], [0], [0], [1], [0, 0, 1, 1], [], []>} : vector<4x64xbf16>, vector<64x32xbf16>, vector<4x32xf32> -> vector<4x32xf32>
    %74 = arith.addf %68, %73 : vector<4x32xf32>
    %c0_75 = arith.constant 0 : index
    %c0_76 = arith.constant 0 : index
    %75 = vector.load %arg7[%c0_75, %c0_76] : memref<1x32xf32, #tpu.memory_space<vmem>>, vector<1x32xf32>
    %76 = vector.broadcast %75 : vector<1x32xf32> to vector<4x32xf32>
    %77 = arith.addf %74, %76 : vector<4x32xf32>
    %cst_77 = arith.constant 0.000000e+00 : f32
    %78 = vector.broadcast %cst_77 : f32 to vector<4x32xf32>
    %79 = arith.maximumf %77, %78 : vector<4x32xf32>
    %cst_78 = arith.constant 0.000000e+00 : f32
    %80 = vector.broadcast %cst_78 : f32 to vector<1x32xf32>
    %c0_79 = arith.constant 0 : index
    %c0_80 = arith.constant 0 : index
    %81 = vector.load %arg21[%c0_79, %c0_80] : memref<6x32xf32, #tpu.memory_space<vmem>>, vector<1x32xf32>
    tpu.vector_store %arg21[%c0_79, %c0_80], %80 {strides = array<i32>} : memref<6x32xf32, #tpu.memory_space<vmem>>, vector<1x32xf32>,
    %c5 = arith.constant 5 : index
    %c0_81 = arith.constant 0 : index
    %82 = vector.load %arg21[%c5, %c0_81] : memref<6x32xf32, #tpu.memory_space<vmem>>, vector<1x32xf32>
    tpu.vector_store %arg21[%c5, %c0_81], %80 {strides = array<i32>} : memref<6x32xf32, #tpu.memory_space<vmem>>, vector<1x32xf32>,
    %c1_82 = arith.constant 1 : index
    %c0_83 = arith.constant 0 : index
    %83 = vector.load %arg21[%c1_82, %c0_83] : memref<6x32xf32, #tpu.memory_space<vmem>>, vector<4x32xf32>
    tpu.vector_store %arg21[%c1_82, %c0_83], %79 {strides = array<i32>} : memref<6x32xf32, #tpu.memory_space<vmem>>, vector<4x32xf32>,
    %c0_84 = arith.constant 0 : index
    %c0_85 = arith.constant 0 : index
    %84 = vector.load %arg21[%c0_84, %c0_85] : memref<6x32xf32, #tpu.memory_space<vmem>>, vector<4x32xf32>
    %85 = arith.truncf %84 : vector<4x32xf32> to vector<4x32xbf16>
    %c0_86 = arith.constant 0 : index
    %c0_87 = arith.constant 0 : index
    %c0_88 = arith.constant 0 : index
    %86 = vector.load %arg8[%c0_86, %c0_87, %c0_88] : memref<3x32x32xbf16, #tpu.memory_space<vmem>>, vector<1x32x32xbf16>
    %87 = vector.shape_cast %86 : vector<1x32x32xbf16> to vector<32x32xbf16>
    %cst_89 = arith.constant dense<0.000000e+00> : vector<4x32xf32>
    %88 = tpu.matmul %85, %87, %cst_89 {dimension_numbers = #tpu.dot_dimension_numbers<[1], [0], [0], [1], [0, 0, 1, 1], [], []>} : vector<4x32xbf16>, vector<32x32xbf16>, vector<4x32xf32> -> vector<4x32xf32>
    %c1_90 = arith.constant 1 : index
    %c0_91 = arith.constant 0 : index
    %89 = vector.load %arg21[%c1_90, %c0_91] : memref<6x32xf32, #tpu.memory_space<vmem>>, vector<4x32xf32>
    %90 = arith.truncf %89 : vector<4x32xf32> to vector<4x32xbf16>
    %c1_92 = arith.constant 1 : index
    %c0_93 = arith.constant 0 : index
    %c0_94 = arith.constant 0 : index
    %91 = vector.load %arg8[%c1_92, %c0_93, %c0_94] : memref<3x32x32xbf16, #tpu.memory_space<vmem>>, vector<1x32x32xbf16>
    %92 = vector.shape_cast %91 : vector<1x32x32xbf16> to vector<32x32xbf16>
    %cst_95 = arith.constant dense<0.000000e+00> : vector<4x32xf32>
    %93 = tpu.matmul %90, %92, %cst_95 {dimension_numbers = #tpu.dot_dimension_numbers<[1], [0], [0], [1], [0, 0, 1, 1], [], []>} : vector<4x32xbf16>, vector<32x32xbf16>, vector<4x32xf32> -> vector<4x32xf32>
    %94 = arith.addf %88, %93 : vector<4x32xf32>
    %c2_96 = arith.constant 2 : index
    %c0_97 = arith.constant 0 : index
    %95 = vector.load %arg21[%c2_96, %c0_97] : memref<6x32xf32, #tpu.memory_space<vmem>>, vector<4x32xf32>
    %96 = arith.truncf %95 : vector<4x32xf32> to vector<4x32xbf16>
    %c2_98 = arith.constant 2 : index
    %c0_99 = arith.constant 0 : index
    %c0_100 = arith.constant 0 : index
    %97 = vector.load %arg8[%c2_98, %c0_99, %c0_100] : memref<3x32x32xbf16, #tpu.memory_space<vmem>>, vector<1x32x32xbf16>
    %98 = vector.shape_cast %97 : vector<1x32x32xbf16> to vector<32x32xbf16>
    %cst_101 = arith.constant dense<0.000000e+00> : vector<4x32xf32>
    %99 = tpu.matmul %96, %98, %cst_101 {dimension_numbers = #tpu.dot_dimension_numbers<[1], [0], [0], [1], [0, 0, 1, 1], [], []>} : vector<4x32xbf16>, vector<32x32xbf16>, vector<4x32xf32> -> vector<4x32xf32>
    %100 = arith.addf %94, %99 : vector<4x32xf32>
    %c0_102 = arith.constant 0 : index
    %c0_103 = arith.constant 0 : index
    %101 = vector.load %arg9[%c0_102, %c0_103] : memref<1x32xf32, #tpu.memory_space<vmem>>, vector<1x32xf32>
    %102 = vector.broadcast %101 : vector<1x32xf32> to vector<4x32xf32>
    %103 = arith.addf %100, %102 : vector<4x32xf32>
    %cst_104 = arith.constant 0.000000e+00 : f32
    %104 = vector.broadcast %cst_104 : f32 to vector<4x32xf32>
    %105 = arith.maximumf %103, %104 : vector<4x32xf32>
    %106 = arith.truncf %105 : vector<4x32xf32> to vector<4x32xbf16>
    %c0_105 = arith.constant 0 : index
    %c0_106 = arith.constant 0 : index
    %c0_107 = arith.constant 0 : index
    %107 = vector.load %arg11[%c0_105, %c0_106, %c0_107] : memref<3x32x64xbf16, #tpu.memory_space<vmem>>, vector<1x32x64xbf16>
    %108 = vector.shape_cast %107 : vector<1x32x64xbf16> to vector<32x64xbf16>
    %cst_108 = arith.constant dense<0.000000e+00> : vector<4x64xf32>
    %109 = tpu.matmul %106, %108, %cst_108 {dimension_numbers = #tpu.dot_dimension_numbers<[1], [0], [0], [1], [0, 0, 1, 1], [], []>} : vector<4x32xbf16>, vector<32x64xbf16>, vector<4x64xf32> -> vector<4x64xf32>
    %c0_109 = arith.constant 0 : index
    %c0_110 = arith.constant 0 : index
    %c0_111 = arith.constant 0 : index
    %110 = vector.load %arg10[%c0_109, %c0_110, %c0_111] : memref<3x8x4xbf16, #tpu.memory_space<vmem>>, vector<1x8x4xbf16>
    %111 = vector.shape_cast %110 : vector<1x8x4xbf16> to vector<8x4xbf16>
    %112 = arith.truncf %109 : vector<4x64xf32> to vector<4x64xbf16>
    %cst_112 = arith.constant dense<0.000000e+00> : vector<8x64xf32>
    %113 = tpu.matmul %111, %112, %cst_112 {dimension_numbers = #tpu.dot_dimension_numbers<[1], [0], [0], [1], [0, 0, 1, 1], [], []>} : vector<8x4xbf16>, vector<4x64xbf16>, vector<8x64xf32> -> vector<8x64xf32>
    %c1_113 = arith.constant 1 : index
    %c0_114 = arith.constant 0 : index
    %c0_115 = arith.constant 0 : index
    %114 = vector.load %arg11[%c1_113, %c0_114, %c0_115] : memref<3x32x64xbf16, #tpu.memory_space<vmem>>, vector<1x32x64xbf16>
    %115 = vector.shape_cast %114 : vector<1x32x64xbf16> to vector<32x64xbf16>
    %cst_116 = arith.constant dense<0.000000e+00> : vector<4x64xf32>
    %116 = tpu.matmul %106, %115, %cst_116 {dimension_numbers = #tpu.dot_dimension_numbers<[1], [0], [0], [1], [0, 0, 1, 1], [], []>} : vector<4x32xbf16>, vector<32x64xbf16>, vector<4x64xf32> -> vector<4x64xf32>
    %c1_117 = arith.constant 1 : index
    %c0_118 = arith.constant 0 : index
    %c0_119 = arith.constant 0 : index
    %117 = vector.load %arg10[%c1_117, %c0_118, %c0_119] : memref<3x8x4xbf16, #tpu.memory_space<vmem>>, vector<1x8x4xbf16>
    %118 = vector.shape_cast %117 : vector<1x8x4xbf16> to vector<8x4xbf16>
    %119 = arith.truncf %116 : vector<4x64xf32> to vector<4x64xbf16>
    %cst_120 = arith.constant dense<0.000000e+00> : vector<8x64xf32>
    %120 = tpu.matmul %118, %119, %cst_120 {dimension_numbers = #tpu.dot_dimension_numbers<[1], [0], [0], [1], [0, 0, 1, 1], [], []>} : vector<8x4xbf16>, vector<4x64xbf16>, vector<8x64xf32> -> vector<8x64xf32>
    %121 = arith.addf %113, %120 : vector<8x64xf32>
    %c2_121 = arith.constant 2 : index
    %c0_122 = arith.constant 0 : index
    %c0_123 = arith.constant 0 : index
    %122 = vector.load %arg11[%c2_121, %c0_122, %c0_123] : memref<3x32x64xbf16, #tpu.memory_space<vmem>>, vector<1x32x64xbf16>
    %123 = vector.shape_cast %122 : vector<1x32x64xbf16> to vector<32x64xbf16>
    %cst_124 = arith.constant dense<0.000000e+00> : vector<4x64xf32>
    %124 = tpu.matmul %106, %123, %cst_124 {dimension_numbers = #tpu.dot_dimension_numbers<[1], [0], [0], [1], [0, 0, 1, 1], [], []>} : vector<4x32xbf16>, vector<32x64xbf16>, vector<4x64xf32> -> vector<4x64xf32>
    %c2_125 = arith.constant 2 : index
    %c0_126 = arith.constant 0 : index
    %c0_127 = arith.constant 0 : index
    %125 = vector.load %arg10[%c2_125, %c0_126, %c0_127] : memref<3x8x4xbf16, #tpu.memory_space<vmem>>, vector<1x8x4xbf16>
    %126 = vector.shape_cast %125 : vector<1x8x4xbf16> to vector<8x4xbf16>
    %127 = arith.truncf %124 : vector<4x64xf32> to vector<4x64xbf16>
    %cst_128 = arith.constant dense<0.000000e+00> : vector<8x64xf32>
    %128 = tpu.matmul %126, %127, %cst_128 {dimension_numbers = #tpu.dot_dimension_numbers<[1], [0], [0], [1], [0, 0, 1, 1], [], []>} : vector<8x4xbf16>, vector<4x64xbf16>, vector<8x64xf32> -> vector<8x64xf32>
    %129 = arith.addf %121, %128 : vector<8x64xf32>
    %c0_129 = arith.constant 0 : index
    %c0_130 = arith.constant 0 : index
    %130 = vector.load %arg12[%c0_129, %c0_130] : memref<1x64xf32, #tpu.memory_space<vmem>>, vector<1x64xf32>
    %131 = vector.broadcast %130 : vector<1x64xf32> to vector<8x64xf32>
    %132 = arith.addf %129, %131 : vector<8x64xf32>
    %133 = arith.addf %132, %50 : vector<8x64xf32>
    %cst_131 = arith.constant 0.000000e+00 : f32
    %134 = vector.broadcast %cst_131 : f32 to vector<8x64xf32>
    %135 = arith.maximumf %133, %134 : vector<8x64xf32>
    %c0_132 = arith.constant 0 : index
    %c0_133 = arith.constant 0 : index
    %c0_134 = arith.constant 0 : index
    %136 = vector.load %arg18[%c0_132, %c0_133, %c0_134] : memref<1x8x64xf32, #tpu.memory_space<vmem>>, vector<1x8x64xf32>
    %137 = vector.shape_cast %136 : vector<1x8x64xf32> to vector<8x64xf32>
    %138 = vector.shape_cast %135 : vector<8x64xf32> to vector<1x8x64xf32>
    tpu.vector_store %arg18[%c0_132, %c0_133, %c0_134], %138 {strides = array<i32>} : memref<1x8x64xf32, #tpu.memory_space<vmem>>, vector<1x8x64xf32>,
    %139 = arith.truncf %135 : vector<8x64xf32> to vector<8x64xbf16>
    %c0_135 = arith.constant 0 : index
    %c0_136 = arith.constant 0 : index
    %c0_137 = arith.constant 0 : index
    %140 = vector.load %arg14[%c0_135, %c0_136, %c0_137] : memref<3x64x64xbf16, #tpu.memory_space<vmem>>, vector<1x64x64xbf16>
    %141 = vector.shape_cast %140 : vector<1x64x64xbf16> to vector<64x64xbf16>
    %cst_138 = arith.constant dense<0.000000e+00> : vector<8x64xf32>
    %142 = tpu.matmul %139, %141, %cst_138 {dimension_numbers = #tpu.dot_dimension_numbers<[1], [0], [0], [1], [0, 0, 1, 1], [], []>} : vector<8x64xbf16>, vector<64x64xbf16>, vector<8x64xf32> -> vector<8x64xf32>
    %c0_139 = arith.constant 0 : index
    %c0_140 = arith.constant 0 : index
    %c0_141 = arith.constant 0 : index
    %143 = vector.load %arg13[%c0_139, %c0_140, %c0_141] : memref<3x16x8xbf16, #tpu.memory_space<vmem>>, vector<1x16x8xbf16>
    %144 = vector.shape_cast %143 : vector<1x16x8xbf16> to vector<16x8xbf16>
    %145 = arith.truncf %142 : vector<8x64xf32> to vector<8x64xbf16>
    %cst_142 = arith.constant dense<0.000000e+00> : vector<16x64xf32>
    %146 = tpu.matmul %144, %145, %cst_142 {dimension_numbers = #tpu.dot_dimension_numbers<[1], [0], [0], [1], [0, 0, 1, 1], [], []>} : vector<16x8xbf16>, vector<8x64xbf16>, vector<16x64xf32> -> vector<16x64xf32>
    %c1_143 = arith.constant 1 : index
    %c0_144 = arith.constant 0 : index
    %c0_145 = arith.constant 0 : index
    %147 = vector.load %arg14[%c1_143, %c0_144, %c0_145] : memref<3x64x64xbf16, #tpu.memory_space<vmem>>, vector<1x64x64xbf16>
    %148 = vector.shape_cast %147 : vector<1x64x64xbf16> to vector<64x64xbf16>
    %cst_146 = arith.constant dense<0.000000e+00> : vector<8x64xf32>
    %149 = tpu.matmul %139, %148, %cst_146 {dimension_numbers = #tpu.dot_dimension_numbers<[1], [0], [0], [1], [0, 0, 1, 1], [], []>} : vector<8x64xbf16>, vector<64x64xbf16>, vector<8x64xf32> -> vector<8x64xf32>
    %c1_147 = arith.constant 1 : index
    %c0_148 = arith.constant 0 : index
    %c0_149 = arith.constant 0 : index
    %150 = vector.load %arg13[%c1_147, %c0_148, %c0_149] : memref<3x16x8xbf16, #tpu.memory_space<vmem>>, vector<1x16x8xbf16>
    %151 = vector.shape_cast %150 : vector<1x16x8xbf16> to vector<16x8xbf16>
    %152 = arith.truncf %149 : vector<8x64xf32> to vector<8x64xbf16>
    %cst_150 = arith.constant dense<0.000000e+00> : vector<16x64xf32>
    %153 = tpu.matmul %151, %152, %cst_150 {dimension_numbers = #tpu.dot_dimension_numbers<[1], [0], [0], [1], [0, 0, 1, 1], [], []>} : vector<16x8xbf16>, vector<8x64xbf16>, vector<16x64xf32> -> vector<16x64xf32>
    %154 = arith.addf %146, %153 : vector<16x64xf32>
    %c2_151 = arith.constant 2 : index
    %c0_152 = arith.constant 0 : index
    %c0_153 = arith.constant 0 : index
    %155 = vector.load %arg14[%c2_151, %c0_152, %c0_153] : memref<3x64x64xbf16, #tpu.memory_space<vmem>>, vector<1x64x64xbf16>
    %156 = vector.shape_cast %155 : vector<1x64x64xbf16> to vector<64x64xbf16>
    %cst_154 = arith.constant dense<0.000000e+00> : vector<8x64xf32>
    %157 = tpu.matmul %139, %156, %cst_154 {dimension_numbers = #tpu.dot_dimension_numbers<[1], [0], [0], [1], [0, 0, 1, 1], [], []>} : vector<8x64xbf16>, vector<64x64xbf16>, vector<8x64xf32> -> vector<8x64xf32>
    %c2_155 = arith.constant 2 : index
    %c0_156 = arith.constant 0 : index
    %c0_157 = arith.constant 0 : index
    %158 = vector.load %arg13[%c2_155, %c0_156, %c0_157] : memref<3x16x8xbf16, #tpu.memory_space<vmem>>, vector<1x16x8xbf16>
    %159 = vector.shape_cast %158 : vector<1x16x8xbf16> to vector<16x8xbf16>
    %160 = arith.truncf %157 : vector<8x64xf32> to vector<8x64xbf16>
    %cst_158 = arith.constant dense<0.000000e+00> : vector<16x64xf32>
    %161 = tpu.matmul %159, %160, %cst_158 {dimension_numbers = #tpu.dot_dimension_numbers<[1], [0], [0], [1], [0, 0, 1, 1], [], []>} : vector<16x8xbf16>, vector<8x64xbf16>, vector<16x64xf32> -> vector<16x64xf32>
    %162 = arith.addf %154, %161 : vector<16x64xf32>
    %c0_159 = arith.constant 0 : index
    %c0_160 = arith.constant 0 : index
    %163 = vector.load %arg15[%c0_159, %c0_160] : memref<1x64xf32, #tpu.memory_space<vmem>>, vector<1x64xf32>
    %164 = vector.broadcast %163 : vector<1x64xf32> to vector<16x64xf32>
    %165 = arith.addf %162, %164 : vector<16x64xf32>
    %c0_161 = arith.constant 0 : index
    %c0_162 = arith.constant 0 : index
    %c0_163 = arith.constant 0 : index
    %166 = vector.load %arg16[%c0_161, %c0_162, %c0_163] : memref<1x16x64xf32, #tpu.memory_space<vmem>>, vector<1x16x64xf32>
    %167 = vector.shape_cast %166 : vector<1x16x64xf32> to vector<16x64xf32>
    %168 = vector.shape_cast %165 : vector<16x64xf32> to vector<1x16x64xf32>
    tpu.vector_store %arg16[%c0_161, %c0_162, %c0_163], %168 {strides = array<i32>} : memref<1x16x64xf32, #tpu.memory_space<vmem>>, vector<1x16x64xf32>,
    return
  }
  func.func @transform_0(%arg0: i32) -> (i32, i32, i32) {
    %c0_i32 = arith.constant 0 : i32
    %c0_i32_0 = arith.constant 0 : i32
    %c0_i32_1 = arith.constant 0 : i32
    return %arg0, %c0_i32, %c0_i32_0 : i32, i32, i32
  }
  func.func @transform_1(%arg0: i32) -> (i32, i32, i32) {
    %c0_i32 = arith.constant 0 : i32
    %c0_i32_0 = arith.constant 0 : i32
    %c0_i32_1 = arith.constant 0 : i32
    %c0_i32_2 = arith.constant 0 : i32
    return %c0_i32, %c0_i32_0, %c0_i32_1 : i32, i32, i32
  }
  func.func @transform_2(%arg0: i32) -> (i32, i32) {
    %c0_i32 = arith.constant 0 : i32
    %c0_i32_0 = arith.constant 0 : i32
    %c0_i32_1 = arith.constant 0 : i32
    return %c0_i32, %c0_i32_0 : i32, i32
  }
  func.func @transform_3(%arg0: i32) -> (i32, i32, i32) {
    %c0_i32 = arith.constant 0 : i32
    %c0_i32_0 = arith.constant 0 : i32
    %c0_i32_1 = arith.constant 0 : i32
    %c0_i32_2 = arith.constant 0 : i32
    return %c0_i32, %c0_i32_0, %c0_i32_1 : i32, i32, i32
  }
  func.func @transform_4(%arg0: i32) -> (i32, i32) {
    %c0_i32 = arith.constant 0 : i32
    %c0_i32_0 = arith.constant 0 : i32
    %c0_i32_1 = arith.constant 0 : i32
    return %c0_i32, %c0_i32_0 : i32, i32
  }
  func.func @transform_5(%arg0: i32) -> (i32, i32, i32) {
    %c0_i32 = arith.constant 0 : i32
    %c0_i32_0 = arith.constant 0 : i32
    %c0_i32_1 = arith.constant 0 : i32
    %c0_i32_2 = arith.constant 0 : i32
    return %c0_i32, %c0_i32_0, %c0_i32_1 : i32, i32, i32
  }
  func.func @transform_6(%arg0: i32) -> (i32, i32) {
    %c0_i32 = arith.constant 0 : i32
    %c0_i32_0 = arith.constant 0 : i32
    %c0_i32_1 = arith.constant 0 : i32
    return %c0_i32, %c0_i32_0 : i32, i32
  }
  func.func @transform_7(%arg0: i32) -> (i32, i32, i32) {
    %c0_i32 = arith.constant 0 : i32
    %c0_i32_0 = arith.constant 0 : i32
    %c0_i32_1 = arith.constant 0 : i32
    %c0_i32_2 = arith.constant 0 : i32
    return %c0_i32, %c0_i32_0, %c0_i32_1 : i32, i32, i32
  }
  func.func @transform_8(%arg0: i32) -> (i32, i32) {
    %c0_i32 = arith.constant 0 : i32
    %c0_i32_0 = arith.constant 0 : i32
    %c0_i32_1 = arith.constant 0 : i32
    return %c0_i32, %c0_i32_0 : i32, i32
  }
  func.func @transform_9(%arg0: i32) -> (i32, i32, i32) {
    %c0_i32 = arith.constant 0 : i32
    %c0_i32_0 = arith.constant 0 : i32
    %c0_i32_1 = arith.constant 0 : i32
    %c0_i32_2 = arith.constant 0 : i32
    return %c0_i32, %c0_i32_0, %c0_i32_1 : i32, i32, i32
  }
  func.func @transform_10(%arg0: i32) -> (i32, i32, i32) {
    %c0_i32 = arith.constant 0 : i32
    %c0_i32_0 = arith.constant 0 : i32
    %c0_i32_1 = arith.constant 0 : i32
    %c0_i32_2 = arith.constant 0 : i32
    return %c0_i32, %c0_i32_0, %c0_i32_1 : i32, i32, i32
  }
  func.func @transform_11(%arg0: i32) -> (i32, i32) {
    %c0_i32 = arith.constant 0 : i32
    %c0_i32_0 = arith.constant 0 : i32
    %c0_i32_1 = arith.constant 0 : i32
    return %c0_i32, %c0_i32_0 : i32, i32
  }
  func.func @transform_12(%arg0: i32) -> (i32, i32, i32) {
    %c0_i32 = arith.constant 0 : i32
    %c0_i32_0 = arith.constant 0 : i32
    %c0_i32_1 = arith.constant 0 : i32
    %c0_i32_2 = arith.constant 0 : i32
    return %c0_i32, %c0_i32_0, %c0_i32_1 : i32, i32, i32
  }
  func.func @transform_13(%arg0: i32) -> (i32, i32, i32) {
    %c0_i32 = arith.constant 0 : i32
    %c0_i32_0 = arith.constant 0 : i32
    %c0_i32_1 = arith.constant 0 : i32
    %c0_i32_2 = arith.constant 0 : i32
    return %c0_i32, %c0_i32_0, %c0_i32_1 : i32, i32, i32
  }
  func.func @transform_14(%arg0: i32) -> (i32, i32) {
    %c0_i32 = arith.constant 0 : i32
    %c0_i32_0 = arith.constant 0 : i32
    %c0_i32_1 = arith.constant 0 : i32
    return %c0_i32, %c0_i32_0 : i32, i32
  }
  func.func @transform_15(%arg0: i32) -> (i32, i32, i32) {
    %c0_i32 = arith.constant 0 : i32
    %c0_i32_0 = arith.constant 0 : i32
    %c0_i32_1 = arith.constant 0 : i32
    return %arg0, %c0_i32, %c0_i32_0 : i32, i32, i32
  }
  func.func @transform_16(%arg0: i32) -> (i32, i32, i32) {
    %c0_i32 = arith.constant 0 : i32
    %c0_i32_0 = arith.constant 0 : i32
    %c0_i32_1 = arith.constant 0 : i32
    return %arg0, %c0_i32, %c0_i32_0 : i32, i32, i32
  }
  func.func @transform_17(%arg0: i32) -> (i32, i32, i32) {
    %c0_i32 = arith.constant 0 : i32
    %c0_i32_0 = arith.constant 0 : i32
    %c0_i32_1 = arith.constant 0 : i32
    return %arg0, %c0_i32, %c0_i32_0 : i32, i32, i32
  }
}

</mosaic_0001>

<llo_original>
// kernel: hourglass2d_forward.1
$region0: #{hourglass2d_forward.1}
  #allocation0 [shape = 'u32[]', space=smem, size = 0x4, offset = 0x4, fixed_abs, tag = 'smem constant byte address 0x4 - core index']
  #allocation1 [shape = 'u32[144,128]{1,0:T(1,128)}', space=vmem, size = 0x12000, scoped, tag = 'internal scratch']
  #allocation2 [shape = 'f32[10,64]{1,0:T(8,128)}', space=vmem, size = 0x2000, scoped, tag = 'scratch operand']
  #allocation3 [shape = 'f32[10,64]{1,0:T(8,128)}', space=vmem, size = 0x2000, scoped, tag = 'scratch operand']
  #allocation4 [shape = 'f32[6,32]{1,0:T(8,128)}', space=vmem, size = 0x1000, scoped, tag = 'scratch operand']
  %s0 = inlined_call_operand.vmem [shape: f32[2,18,64], index: 0, kind: input, shape index: {}]
  %s1 = inlined_call_operand.vmem [shape: bf16[3,64,64], index: 1, kind: input, shape index: {}]
  %s2 = inlined_call_operand.vmem [shape: f32[1,64], index: 2, kind: input, shape index: {}]
  %s3 = inlined_call_operand.vmem [shape: bf16[3,64,64], index: 3, kind: input, shape index: {}]
  %s4 = inlined_call_operand.vmem [shape: f32[1,64], index: 4, kind: input, shape index: {}]
  %s5 = inlined_call_operand.vmem [shape: bf16[3,64,32], index: 5, kind: input, shape index: {}]
  %s6 = inlined_call_operand.vmem [shape: f32[1,32], index: 6, kind: input, shape index: {}]
  %s7 = inlined_call_operand.vmem [shape: bf16[3,32,32], index: 7, kind: input, shape index: {}]
  %s8 = inlined_call_operand.vmem [shape: f32[1,32], index: 8, kind: input, shape index: {}]
  %s9 = inlined_call_operand.vmem [shape: bf16[3,8,4], index: 9, kind: input, shape index: {}]
  %s10 = inlined_call_operand.vmem [shape: bf16[3,32,64], index: 10, kind: input, shape index: {}]
  %s11 = inlined_call_operand.vmem [shape: f32[1,64], index: 11, kind: input, shape index: {}]
  %s12 = inlined_call_operand.vmem [shape: bf16[3,16,8], index: 12, kind: input, shape index: {}]
  %s13 = inlined_call_operand.vmem [shape: bf16[3,64,64], index: 13, kind: input, shape index: {}]
  %s14 = inlined_call_operand.vmem [shape: f32[1,64], index: 14, kind: input, shape index: {}]
  %s15 = inlined_call_operand.vmem [shape: f32[2,16,64], index: 15, kind: output, shape index: {0}]
  %s16 = inlined_call_operand.vmem [shape: f32[2,8,64], index: 16, kind: output, shape index: {1}]
  %s17 = inlined_call_operand.vmem [shape: f32[2,8,64], index: 17, kind: output, shape index: {2}]
  %18 = xla_tuple %s15, %s16, %s17
  %s19 = sld [smem:[#allocation0]]
  $region109: #{hourglass2d_forward.1} parent=0
    _
  %s21 = ssub.s32 1, %s19
  %s22 = scalar_select 0, %s21, %s19
  loop: start=0, step=1, limit=4
  $region2: #{hourglass2d_forward.1} parent=0 // loop_pre_header
    _
  $region3: #{hourglass2d_forward.1} parent=0 // loop_header
    %s24 = sphi 0, %s28
    %p25 = scmp.ge.s32.totalorder %s24, 4
    %s34 = sphi 0, %s36
    %s37 = sphi 0, %s34
    %s38 = sphi 0, %s37
    %s54 = sphi 0, %s38
    %s58 = sphi 0, %s58
    %s60 = sphi 0, %s58
    %s61 = sphi 0, %s60
    %s75 = sphi 0, %s61
    %s79 = sphi 0, %s79
    %s81 = sphi 0, %s79
    %s82 = sphi 0, %s81
    %s96 = sphi 0, %s82
    %s100 = sphi 0, %s100
    %s102 = sphi 0, %s100
    %s103 = sphi 0, %s102
    %s117 = sphi 0, %s103
    %s121 = sphi 0, %s121
    %s123 = sphi 0, %s121
    %s124 = sphi 0, %s123
    %s138 = sphi 0, %s124
    %s142 = sphi 0, %s142
    %s144 = sphi 0, %s142
    %s145 = sphi 0, %s144
    %s159 = sphi 0, %s145
    %s163 = sphi 0, %s163
    %s165 = sphi 0, %s163
    %s166 = sphi 0, %s165
    %s180 = sphi 0, %s166
    %s184 = sphi 0, %s184
    %s186 = sphi 0, %s184
    %s187 = sphi 0, %s186
    %s201 = sphi 0, %s187
    %s205 = sphi 0, %s205
    %s207 = sphi 0, %s205
    %s208 = sphi 0, %s207
    %s222 = sphi 0, %s208
    %s226 = sphi 0, %s226
    %s228 = sphi 0, %s226
    %s229 = sphi 0, %s228
    %s243 = sphi 0, %s229
    %s247 = sphi 0, %s247
    %s249 = sphi 0, %s247
    %s250 = sphi 0, %s249
    %s264 = sphi 0, %s250
    %s268 = sphi 0, %s268
    %s270 = sphi 0, %s268
    %s271 = sphi 0, %s270
    %s285 = sphi 0, %s271
    %s289 = sphi 0, %s289
    %s291 = sphi 0, %s289
    %s292 = sphi 0, %s291
    %s306 = sphi 0, %s292
    %s310 = sphi 0, %s310
    %s312 = sphi 0, %s310
    %s313 = sphi 0, %s312
    %s327 = sphi 0, %s313
    %s331 = sphi 0, %s331
    %s333 = sphi 0, %s331
    %s334 = sphi 0, %s333
    %s348 = sphi 0, %s334
    %s354 = sphi 0, %s356
    %s357 = sphi 0, %s354
    %s358 = sphi 0, %s357
    %s374 = sphi 0, %s358
    %s380 = sphi 0, %s382
    %s383 = sphi 0, %s380
    %s384 = sphi 0, %s383
    %s400 = sphi 0, %s384
    %s406 = sphi 0, %s408
    %s409 = sphi 0, %s406
    %s410 = sphi 0, %s409
    %s426 = sphi 0, %s410
  $region4: #{hourglass2d_forward.1} parent=0 // loop_header_branch
    %27 = sbr.rel (%p25) target = $region8
  $region5: #{hourglass2d_forward.1} parent=0 // loop_body
    %s29 = ssub.s32 %s24, 1
    %s30 = ssub.s32 %s24, 2
    %s31 = sadd.s32 %s24, 1
    %s32 = ssub.s32 %s24, %s31
    %p33 = scmp.eq.s32.totalorder %s32, 0
    %s35 = sadd.s32 %s34, 1
    %s36 = scalar_select %p33, %s34, %s35
    %p39 = pneg %p33
    %p40 = scmp.eq.s32.totalorder %s24, 1
    %p41 = por %p39, %p40
    %p42 = scmp.ne.s32.totalorder %s34, %s37
    %p43 = scmp.eq.s32.totalorder %s24, 0
    %p44 = por %p42, %p43
    %p45 = scmp.ne.s32.totalorder %s34, %s37
    %p46 = scmp.eq.s32.totalorder %s29, 1
    %p47 = por %p45, %p46
    %p48 = scmp.ne.s32.totalorder %s37, %s38
    %p49 = scmp.eq.s32.totalorder %s29, 0
    %p50 = por %p48, %p49
    %p51 = scmp.ne.s32.totalorder %s37, %s38
    %p52 = scmp.eq.s32.totalorder %s30, 1
    %p53 = por %p51, %p52
    %p55 = scmp.ne.s32.totalorder %s38, %s54
    %p56 = scmp.eq.s32.totalorder %s30, 0
    %p57 = por %p55, %p56
    %s59 = sadd.s32 %s58, 1
    %p62 = scmp.eq.s32.totalorder %s24, 1
    %p63 = scmp.ne.s32.totalorder %s58, %s60
    %p64 = scmp.eq.s32.totalorder %s24, 0
    %p65 = por %p63, %p64
    %p66 = scmp.ne.s32.totalorder %s58, %s60
    %p67 = scmp.eq.s32.totalorder %s29, 1
    %p68 = por %p66, %p67
    %p69 = scmp.ne.s32.totalorder %s60, %s61
    %p70 = scmp.eq.s32.totalorder %s29, 0
    %p71 = por %p69, %p70
    %p72 = scmp.ne.s32.totalorder %s60, %s61
    %p73 = scmp.eq.s32.totalorder %s30, 1
    %p74 = por %p72, %p73
    %p76 = scmp.ne.s32.totalorder %s61, %s75
    %p77 = scmp.eq.s32.totalorder %s30, 0
    %p78 = por %p76, %p77
    %s80 = sadd.s32 %s79, 1
    %p83 = scmp.eq.s32.totalorder %s24, 1
    %p84 = scmp.ne.s32.totalorder %s79, %s81
    %p85 = scmp.eq.s32.totalorder %s24, 0
    %p86 = por %p84, %p85
    %p87 = scmp.ne.s32.totalorder %s79, %s81
    %p88 = scmp.eq.s32.totalorder %s29, 1
    %p89 = por %p87, %p88
    %p90 = scmp.ne.s32.totalorder %s81, %s82
    %p91 = scmp.eq.s32.totalorder %s29, 0
    %p92 = por %p90, %p91
    %p93 = scmp.ne.s32.totalorder %s81, %s82
    %p94 = scmp.eq.s32.totalorder %s30, 1
    %p95 = por %p93, %p94
    %p97 = scmp.ne.s32.totalorder %s82, %s96
    %p98 = scmp.eq.s32.totalorder %s30, 0
    %p99 = por %p97, %p98
    %s101 = sadd.s32 %s100, 1
    %p104 = scmp.eq.s32.totalorder %s24, 1
    %p105 = scmp.ne.s32.totalorder %s100, %s102
    %p106 = scmp.eq.s32.totalorder %s24, 0
    %p107 = por %p105, %p106
    %p108 = scmp.ne.s32.totalorder %s100, %s102
    %p109 = scmp.eq.s32.totalorder %s29, 1
    %p110 = por %p108, %p109
    %p111 = scmp.ne.s32.totalorder %s102, %s103
    %p112 = scmp.eq.s32.totalorder %s29, 0
    %p113 = por %p111, %p112
    %p114 = scmp.ne.s32.totalorder %s102, %s103
    %p115 = scmp.eq.s32.totalorder %s30, 1
    %p116 = por %p114, %p115
    %p118 = scmp.ne.s32.totalorder %s103, %s117
    %p119 = scmp.eq.s32.totalorder %s30, 0
    %p120 = por %p118, %p119
    %s122 = sadd.s32 %s121, 1
    %p125 = scmp.eq.s32.totalorder %s24, 1
    %p126 = scmp.ne.s32.totalorder %s121, %s123
    %p127 = scmp.eq.s32.totalorder %s24, 0
    %p128 = por %p126, %p127
    %p129 = scmp.ne.s32.totalorder %s121, %s123
    %p130 = scmp.eq.s32.totalorder %s29, 1
    %p131 = por %p129, %p130
    %p132 = scmp.ne.s32.totalorder %s123, %s124
    %p133 = scmp.eq.s32.totalorder %s29, 0
    %p134 = por %p132, %p133
    %p135 = scmp.ne.s32.totalorder %s123, %s124
    %p136 = scmp.eq.s32.totalorder %s30, 1
    %p137 = por %p135, %p136
    %p139 = scmp.ne.s32.totalorder %s124, %s138
    %p140 = scmp.eq.s32.totalorder %s30, 0
    %p141 = por %p139, %p140
    %s143 = sadd.s32 %s142, 1
    %p146 = scmp.eq.s32.totalorder %s24, 1
    %p147 = scmp.ne.s32.totalorder %s142, %s144
    %p148 = scmp.eq.s32.totalorder %s24, 0
    %p149 = por %p147, %p148
    %p150 = scmp.ne.s32.totalorder %s142, %s144
    %p151 = scmp.eq.s32.totalorder %s29, 1
    %p152 = por %p150, %p151
    %p153 = scmp.ne.s32.totalorder %s144, %s145
    %p154 = scmp.eq.s32.totalorder %s29, 0
    %p155 = por %p153, %p154
    %p156 = scmp.ne.s32.totalorder %s144, %s145
    %p157 = scmp.eq.s32.totalorder %s30, 1
    %p158 = por %p156, %p157
    %p160 = scmp.ne.s32.totalorder %s145, %s159
    %p161 = scmp.eq.s32.totalorder %s30, 0
    %p162 = por %p160, %p161
    %s164 = sadd.s32 %s163, 1
    %p167 = scmp.eq.s32.totalorder %s24, 1
    %p168 = scmp.ne.s32.totalorder %s163, %s165
    %p169 = scmp.eq.s32.totalorder %s24, 0
    %p170 = por %p168, %p169
    %p171 = scmp.ne.s32.totalorder %s163, %s165
    %p172 = scmp.eq.s32.totalorder %s29, 1
    %p173 = por %p171, %p172
    %p174 = scmp.ne.s32.totalorder %s165, %s166
    %p175 = scmp.eq.s32.totalorder %s29, 0
    %p176 = por %p174, %p175
    %p177 = scmp.ne.s32.totalorder %s165, %s166
    %p178 = scmp.eq.s32.totalorder %s30, 1
    %p179 = por %p177, %p178
    %p181 = scmp.ne.s32.totalorder %s166, %s180
    %p182 = scmp.eq.s32.totalorder %s30, 0
    %p183 = por %p181, %p182
    %s185 = sadd.s32 %s184, 1
    %p188 = scmp.eq.s32.totalorder %s24, 1
    %p189 = scmp.ne.s32.totalorder %s184, %s186
    %p190 = scmp.eq.s32.totalorder %s24, 0
    %p191 = por %p189, %p190
    %p192 = scmp.ne.s32.totalorder %s184, %s186
    %p193 = scmp.eq.s32.totalorder %s29, 1
    %p194 = por %p192, %p193
    %p195 = scmp.ne.s32.totalorder %s186, %s187
    %p196 = scmp.eq.s32.totalorder %s29, 0
    %p197 = por %p195, %p196
    %p198 = scmp.ne.s32.totalorder %s186, %s187
    %p199 = scmp.eq.s32.totalorder %s30, 1
    %p200 = por %p198, %p199
    %p202 = scmp.ne.s32.totalorder %s187, %s201
    %p203 = scmp.eq.s32.totalorder %s30, 0
    %p204 = por %p202, %p203
    %s206 = sadd.s32 %s205, 1
    %p209 = scmp.eq.s32.totalorder %s24, 1
    %p210 = scmp.ne.s32.totalorder %s205, %s207
    %p211 = scmp.eq.s32.totalorder %s24, 0
    %p212 = por %p210, %p211
    %p213 = scmp.ne.s32.totalorder %s205, %s207
    %p214 = scmp.eq.s32.totalorder %s29, 1
    %p215 = por %p213, %p214
    %p216 = scmp.ne.s32.totalorder %s207, %s208
    %p217 = scmp.eq.s32.totalorder %s29, 0
    %p218 = por %p216, %p217
    %p219 = scmp.ne.s32.totalorder %s207, %s208
    %p220 = scmp.eq.s32.totalorder %s30, 1
    %p221 = por %p219, %p220
    %p223 = scmp.ne.s32.totalorder %s208, %s222
    %p224 = scmp.eq.s32.totalorder %s30, 0
    %p225 = por %p223, %p224
    %s227 = sadd.s32 %s226, 1
    %p230 = scmp.eq.s32.totalorder %s24, 1
    %p231 = scmp.ne.s32.totalorder %s226, %s228
    %p232 = scmp.eq.s32.totalorder %s24, 0
    %p233 = por %p231, %p232
    %p234 = scmp.ne.s32.totalorder %s226, %s228
    %p235 = scmp.eq.s32.totalorder %s29, 1
    %p236 = por %p234, %p235
    %p237 = scmp.ne.s32.totalorder %s228, %s229
    %p238 = scmp.eq.s32.totalorder %s29, 0
    %p239 = por %p237, %p238
    %p240 = scmp.ne.s32.totalorder %s228, %s229
    %p241 = scmp.eq.s32.totalorder %s30, 1
    %p242 = por %p240, %p241
    %p244 = scmp.ne.s32.totalorder %s229, %s243
    %p245 = scmp.eq.s32.totalorder %s30, 0
    %p246 = por %p244, %p245
    %s248 = sadd.s32 %s247, 1
    %p251 = scmp.eq.s32.totalorder %s24, 1
    %p252 = scmp.ne.s32.totalorder %s247, %s249
    %p253 = scmp.eq.s32.totalorder %s24, 0
    %p254 = por %p252, %p253
    %p255 = scmp.ne.s32.totalorder %s247, %s249
    %p256 = scmp.eq.s32.totalorder %s29, 1
    %p257 = por %p255, %p256
    %p258 = scmp.ne.s32.totalorder %s249, %s250
    %p259 = scmp.eq.s32.totalorder %s29, 0
    %p260 = por %p258, %p259
    %p261 = scmp.ne.s32.totalorder %s249, %s250
    %p262 = scmp.eq.s32.totalorder %s30, 1
    %p263 = por %p261, %p262
    %p265 = scmp.ne.s32.totalorder %s250, %s264
    %p266 = scmp.eq.s32.totalorder %s30, 0
    %p267 = por %p265, %p266
    %s269 = sadd.s32 %s268, 1
    %p272 = scmp.eq.s32.totalorder %s24, 1
    %p273 = scmp.ne.s32.totalorder %s268, %s270
    %p274 = scmp.eq.s32.totalorder %s24, 0
    %p275 = por %p273, %p274
    %p276 = scmp.ne.s32.totalorder %s268, %s270
    %p277 = scmp.eq.s32.totalorder %s29, 1
    %p278 = por %p276, %p277
    %p279 = scmp.ne.s32.totalorder %s270, %s271
    %p280 = scmp.eq.s32.totalorder %s29, 0
    %p281 = por %p279, %p280
    %p282 = scmp.ne.s32.totalorder %s270, %s271
    %p283 = scmp.eq.s32.totalorder %s30, 1
    %p284 = por %p282, %p283
    %p286 = scmp.ne.s32.totalorder %s271, %s285
    %p287 = scmp.eq.s32.totalorder %s30, 0
    %p288 = por %p286, %p287
    %s290 = sadd.s32 %s289, 1
    %p293 = scmp.eq.s32.totalorder %s24, 1
    %p294 = scmp.ne.s32.totalorder %s289, %s291
    %p295 = scmp.eq.s32.totalorder %s24, 0
    %p296 = por %p294, %p295
    %p297 = scmp.ne.s32.totalorder %s289, %s291
    %p298 = scmp.eq.s32.totalorder %s29, 1
    %p299 = por %p297, %p298
    %p300 = scmp.ne.s32.totalorder %s291, %s292
    %p301 = scmp.eq.s32.totalorder %s29, 0
    %p302 = por %p300, %p301
    %p303 = scmp.ne.s32.totalorder %s291, %s292
    %p304 = scmp.eq.s32.totalorder %s30, 1
    %p305 = por %p303, %p304
    %p307 = scmp.ne.s32.totalorder %s292, %s306
    %p308 = scmp.eq.s32.totalorder %s30, 0
    %p309 = por %p307, %p308
    %s311 = sadd.s32 %s310, 1
    %p314 = scmp.eq.s32.totalorder %s24, 1
    %p315 = scmp.ne.s32.totalorder %s310, %s312
    %p316 = scmp.eq.s32.totalorder %s24, 0
    %p317 = por %p315, %p316
    %p318 = scmp.ne.s32.totalorder %s310, %s312
    %p319 = scmp.eq.s32.totalorder %s29, 1
    %p320 = por %p318, %p319
    %p321 = scmp.ne.s32.totalorder %s312, %s313
    %p322 = scmp.eq.s32.totalorder %s29, 0
    %p323 = por %p321, %p322
    %p324 = scmp.ne.s32.totalorder %s312, %s313
    %p325 = scmp.eq.s32.totalorder %s30, 1
    %p326 = por %p324, %p325
    %p328 = scmp.ne.s32.totalorder %s313, %s327
    %p329 = scmp.eq.s32.totalorder %s30, 0
    %p330 = por %p328, %p329
    %s332 = sadd.s32 %s331, 1
    %p335 = scmp.eq.s32.totalorder %s24, 1
    %p336 = scmp.ne.s32.totalorder %s331, %s333
    %p337 = scmp.eq.s32.totalorder %s24, 0
    %p338 = por %p336, %p337
    %p339 = scmp.ne.s32.totalorder %s331, %s333
    %p340 = scmp.eq.s32.totalorder %s29, 1
    %p341 = por %p339, %p340
    %p342 = scmp.ne.s32.totalorder %s333, %s334
    %p343 = scmp.eq.s32.totalorder %s29, 0
    %p344 = por %p342, %p343
    %p345 = scmp.ne.s32.totalorder %s333, %s334
    %p346 = scmp.eq.s32.totalorder %s30, 1
    %p347 = por %p345, %p346
    %p349 = scmp.ne.s32.totalorder %s334, %s348
    %p350 = scmp.eq.s32.totalorder %s30, 0
    %p351 = por %p349, %p350
    %s352 = ssub.s32 %s24, %s31
    %p353 = scmp.eq.s32.totalorder %s352, 0
    %s355 = sadd.s32 %s354, 1
    %s356 = scalar_select %p353, %s354, %s355
    %p359 = pneg %p353
    %p360 = scmp.eq.s32.totalorder %s24, 1
    %p361 = por %p359, %p360
    %p362 = scmp.ne.s32.totalorder %s354, %s357
    %p363 = scmp.eq.s32.totalorder %s24, 0
    %p364 = por %p362, %p363
    %p365 = scmp.ne.s32.totalorder %s354, %s357
    %p366 = scmp.eq.s32.totalorder %s29, 1
    %p367 = por %p365, %p366
    %p368 = scmp.ne.s32.totalorder %s357, %s358
    %p369 = scmp.eq.s32.totalorder %s29, 0
    %p370 = por %p368, %p369
    %p371 = scmp.ne.s32.totalorder %s357, %s358
    %p372 = scmp.eq.s32.totalorder %s30, 1
    %p373 = por %p371, %p372
    %p375 = scmp.ne.s32.totalorder %s358, %s374
    %p376 = scmp.eq.s32.totalorder %s30, 0
    %p377 = por %p375, %p376
    %s378 = ssub.s32 %s24, %s31
    %p379 = scmp.eq.s32.totalorder %s378, 0
    %s381 = sadd.s32 %s380, 1
    %s382 = scalar_select %p379, %s380, %s381
    %p385 = pneg %p379
    %p386 = scmp.eq.s32.totalorder %s24, 1
    %p387 = por %p385, %p386
    %p388 = scmp.ne.s32.totalorder %s380, %s383
    %p389 = scmp.eq.s32.totalorder %s24, 0
    %p390 = por %p388, %p389
    %p391 = scmp.ne.s32.totalorder %s380, %s383
    %p392 = scmp.eq.s32.totalorder %s29, 1
    %p393 = por %p391, %p392
    %p394 = scmp.ne.s32.totalorder %s383, %s384
    %p395 = scmp.eq.s32.totalorder %s29, 0
    %p396 = por %p394, %p395
    %p397 = scmp.ne.s32.totalorder %s383, %s384
    %p398 = scmp.eq.s32.totalorder %s30, 1
    %p399 = por %p397, %p398
    %p401 = scmp.ne.s32.totalorder %s384, %s400
    %p402 = scmp.eq.s32.totalorder %s30, 0
    %p403 = por %p401, %p402
    %s404 = ssub.s32 %s24, %s31
    %p405 = scmp.eq.s32.totalorder %s404, 0
    %s407 = sadd.s32 %s406, 1
    %s408 = scalar_select %p405, %s406, %s407
    %p411 = pneg %p405
    %p412 = scmp.eq.s32.totalorder %s24, 1
    %p413 = por %p411, %p412
    %p414 = scmp.ne.s32.totalorder %s406, %s409
    %p415 = scmp.eq.s32.totalorder %s24, 0
    %p416 = por %p414, %p415
    %p417 = scmp.ne.s32.totalorder %s406, %s409
    %p418 = scmp.eq.s32.totalorder %s29, 1
    %p419 = por %p417, %p418
    %p420 = scmp.ne.s32.totalorder %s409, %s410
    %p421 = scmp.eq.s32.totalorder %s29, 0
    %p422 = por %p420, %p421
    %p423 = scmp.ne.s32.totalorder %s409, %s410
    %p424 = scmp.eq.s32.totalorder %s30, 1
    %p425 = por %p423, %p424
    %p427 = scmp.ne.s32.totalorder %s410, %s426
    %p428 = scmp.eq.s32.totalorder %s30, 0
    %p429 = por %p427, %p428
    %p430 = scmp.le.s32.totalorder 1, %s24
    %p431 = scmp.lt.s32.totalorder %s24, 3
    %p432 = pnand %p430, %p431
    %p433 = pneg %p432
    // Predicated region
    $region9: #{hourglass2d_forward.1} parent=5 // pred_check
      _
    $region10: #{hourglass2d_forward.1} parent=5 // pred_check_branch
      %435 = sbr.rel (%p432) target = $region12
    $region11: #{hourglass2d_forward.1} parent=5 // pred_region
      %s436 = ssub.s32 %s24, 1
      // Predicated region
      $region13: #{hourglass2d_forward.1} parent=11 // pred_check
        %p437 = pneg %p71
      $region14: #{hourglass2d_forward.1} parent=11 // pred_check_branch
        %439 = sbr.rel (%p437) target = $region16
      $region15: #{hourglass2d_forward.1} parent=11 // pred_region
        _
      $region16: #{hourglass2d_forward.1} parent=11 // pred_fallthru
        _
      // Predicated region
      $region17: #{hourglass2d_forward.1} parent=11 // pred_check
        %p440 = pneg %p92
      $region18: #{hourglass2d_forward.1} parent=11 // pred_check_branch
        %442 = sbr.rel (%p440) target = $region20
      $region19: #{hourglass2d_forward.1} parent=11 // pred_region
        _
      $region20: #{hourglass2d_forward.1} parent=11 // pred_fallthru
        _
      // Predicated region
      $region21: #{hourglass2d_forward.1} parent=11 // pred_check
        %p443 = pneg %p113
      $region22: #{hourglass2d_forward.1} parent=11 // pred_check_branch
        %445 = sbr.rel (%p443) target = $region24
      $region23: #{hourglass2d_forward.1} parent=11 // pred_region
        _
      $region24: #{hourglass2d_forward.1} parent=11 // pred_fallthru
        _
      // Predicated region
      $region25: #{hourglass2d_forward.1} parent=11 // pred_check
        %p446 = pneg %p134
      $region26: #{hourglass2d_forward.1} parent=11 // pred_check_branch
        %448 = sbr.rel (%p446) target = $region28
      $region27: #{hourglass2d_forward.1} parent=11 // pred_region
        _
      $region28: #{hourglass2d_forward.1} parent=11 // pred_fallthru
        _
      // Predicated region
      $region29: #{hourglass2d_forward.1} parent=11 // pred_check
        %p449 = pneg %p155
      $region30: #{hourglass2d_forward.1} parent=11 // pred_check_branch
        %451 = sbr.rel (%p449) target = $region32
      $region31: #{hourglass2d_forward.1} parent=11 // pred_region
        _
      $region32: #{hourglass2d_forward.1} parent=11 // pred_fallthru
        _
      // Predicated region
      $region33: #{hourglass2d_forward.1} parent=11 // pred_check
        %p452 = pneg %p176
      $region34: #{hourglass2d_forward.1} parent=11 // pred_check_branch
        %454 = sbr.rel (%p452) target = $region36
      $region35: #{hourglass2d_forward.1} parent=11 // pred_region
        _
      $region36: #{hourglass2d_forward.1} parent=11 // pred_fallthru
        _
      // Predicated region
      $region37: #{hourglass2d_forward.1} parent=11 // pred_check
        %p455 = pneg %p197
      $region38: #{hourglass2d_forward.1} parent=11 // pred_check_branch
        %457 = sbr.rel (%p455) target = $region40
      $region39: #{hourglass2d_forward.1} parent=11 // pred_region
        _
      $region40: #{hourglass2d_forward.1} parent=11 // pred_fallthru
        _
      // Predicated region
      $region41: #{hourglass2d_forward.1} parent=11 // pred_check
        %p458 = pneg %p218
      $region42: #{hourglass2d_forward.1} parent=11 // pred_check_branch
        %460 = sbr.rel (%p458) target = $region44
      $region43: #{hourglass2d_forward.1} parent=11 // pred_region
        _
      $region44: #{hourglass2d_forward.1} parent=11 // pred_fallthru
        _
      // Predicated region
      $region45: #{hourglass2d_forward.1} parent=11 // pred_check
        %p461 = pneg %p239
      $region46: #{hourglass2d_forward.1} parent=11 // pred_check_branch
        %463 = sbr.rel (%p461) target = $region48
      $region47: #{hourglass2d_forward.1} parent=11 // pred_region
        _
      $region48: #{hourglass2d_forward.1} parent=11 // pred_fallthru
        _
      // Predicated region
      $region49: #{hourglass2d_forward.1} parent=11 // pred_check
        %p464 = pneg %p260
      $region50: #{hourglass2d_forward.1} parent=11 // pred_check_branch
        %466 = sbr.rel (%p464) target = $region52
      $region51: #{hourglass2d_forward.1} parent=11 // pred_region
        _
      $region52: #{hourglass2d_forward.1} parent=11 // pred_fallthru
        _
      // Predicated region
      $region53: #{hourglass2d_forward.1} parent=11 // pred_check
        %p467 = pneg %p281
      $region54: #{hourglass2d_forward.1} parent=11 // pred_check_branch
        %469 = sbr.rel (%p467) target = $region56
      $region55: #{hourglass2d_forward.1} parent=11 // pred_region
        _
      $region56: #{hourglass2d_forward.1} parent=11 // pred_fallthru
        _
      // Predicated region
      $region57: #{hourglass2d_forward.1} parent=11 // pred_check
        %p470 = pneg %p302
      $region58: #{hourglass2d_forward.1} parent=11 // pred_check_branch
        %472 = sbr.rel (%p470) target = $region60
      $region59: #{hourglass2d_forward.1} parent=11 // pred_region
        _
      $region60: #{hourglass2d_forward.1} parent=11 // pred_fallthru
        _
      // Predicated region
      $region61: #{hourglass2d_forward.1} parent=11 // pred_check
        %p473 = pneg %p323
      $region62: #{hourglass2d_forward.1} parent=11 // pred_check_branch
        %475 = sbr.rel (%p473) target = $region64
      $region63: #{hourglass2d_forward.1} parent=11 // pred_region
        _
      $region64: #{hourglass2d_forward.1} parent=11 // pred_fallthru
        _
      // Predicated region
      $region65: #{hourglass2d_forward.1} parent=11 // pred_check
        %p476 = pneg %p344
      $region66: #{hourglass2d_forward.1} parent=11 // pred_check_branch
        %478 = sbr.rel (%p476) target = $region68
      $region67: #{hourglass2d_forward.1} parent=11 // pred_region
        _
      $region68: #{hourglass2d_forward.1} parent=11 // pred_fallthru
        _
    $region12: #{hourglass2d_forward.1} parent=5 // pred_fallthru
      _
    %p479 = scmp.lt.s32.totalorder %s24, 2
    // Predicated region
    $region69: #{hourglass2d_forward.1} parent=5 // pred_check
      %p480 = pneg %p479
    $region70: #{hourglass2d_forward.1} parent=5 // pred_check_branch
      %482 = sbr.rel (%p480) target = $region72
    $region71: #{hourglass2d_forward.1} parent=5 // pred_region
      // Predicated region
      $region73: #{hourglass2d_forward.1} parent=71 // pred_check
        %p483 = pneg %p44
      $region74: #{hourglass2d_forward.1} parent=71 // pred_check_branch
        %485 = sbr.rel (%p483) target = $region76
      $region75: #{hourglass2d_forward.1} parent=71 // pred_region
        %p486 = scmp.lt.s32.totalorder %s24, 1
        %s487 = scalar_select %p486, %s24, 1
        %s488 = smul.addr %s487, 3
        %s489 = smul.addr %s488, 8
        %s490 = scalar_lea.vmem %s0, %s489
      $region76: #{hourglass2d_forward.1} parent=71 // pred_fallthru
        _
    $region72: #{hourglass2d_forward.1} parent=5 // pred_fallthru
      _
    %p491 = scmp.le.s32.totalorder 1, %s24
    %p492 = scmp.lt.s32.totalorder %s24, 3
    %p493 = pnand %p491, %p492
    %p494 = pneg %p493
    // Predicated region
    $region77: #{hourglass2d_forward.1} parent=5 // pred_check
      _
    $region78: #{hourglass2d_forward.1} parent=5 // pred_check_branch
      %496 = sbr.rel (%p493) target = $region80
    $region79: #{hourglass2d_forward.1} parent=5 // pred_region
      %s497 = ssub.s32 %s24, 1
      %p498 = scmp.lt.s32.totalorder %s29, 1
      %s499 = scalar_select %p498, %s29, 1
      %s500 = smul.addr %s499, 3
      %s501 = smul.addr %s500, 8
      %s502 = scalar_lea.vmem %s0, %s501
      %p503 = pneg %p50
      %p504 = pneg %p47
      %p505 = pneg %p71
      %p506 = pneg %p68
      %p507 = pneg %p92
      %p508 = pneg %p89
      %p509 = pneg %p113
      %p510 = pneg %p110
      %p511 = pneg %p134
      %p512 = pneg %p131
      %p513 = pneg %p155
      %p514 = pneg %p152
      %p515 = pneg %p176
      %p516 = pneg %p173
      %p517 = pneg %p197
      %p518 = pneg %p194
      %p519 = pneg %p218
      %p520 = pneg %p215
      %p521 = pneg %p239
      %p522 = pneg %p236
      %p523 = pneg %p260
      %p524 = pneg %p257
      %p525 = pneg %p281
      %p526 = pneg %p278
      %p527 = pneg %p302
      %p528 = pneg %p299
      %p529 = pneg %p323
      %p530 = pneg %p320
      %p531 = pneg %p344
      %p532 = pneg %p341
      %p533 = pneg %p370
      %p534 = pneg %p367
      %p535 = scmp.lt.s32.totalorder %s29, 1
      %s536 = scalar_select %p535, %s29, 1
      %s537 = smul.addr %s536, 2
      %s538 = smul.addr %s537, 8
      %s539 = scalar_lea.vmem %s15, %s538
      %p540 = pneg %p396
      %p541 = pneg %p393
      %p542 = scmp.lt.s32.totalorder %s29, 1
      %s543 = scalar_select %p542, %s29, 1
      %s544 = smul.addr %s543, 8
      %s545 = scalar_lea.vmem %s16, %s544
      %p546 = pneg %p422
      %p547 = pneg %p419
      %p548 = scmp.lt.s32.totalorder %s29, 1
      %s549 = scalar_select %p548, %s29, 1
      %s550 = smul.addr %s549, 8
      %s551 = scalar_lea.vmem %s17, %s550
      %p552 = scmp.lt.s32.totalorder %s29, 1
      %s553 = scalar_select %p552, %s29, 1
      %s554 = smul.addr %s553, 3
      %s555 = smul.addr %s554, 8
      %s556 = scalar_lea.vmem %s0, %s555
      %p557 = scmp.lt.s32.totalorder %s29, 1
      %s558 = scalar_select %p557, %s29, 1
      %s559 = smul.addr %s558, 2
      %s560 = smul.addr %s559, 8
      %s561 = scalar_lea.vmem %s15, %s560
      %p562 = scmp.lt.s32.totalorder %s29, 1
      %s563 = scalar_select %p562, %s29, 1
      %s564 = smul.addr %s563, 8
      %s565 = scalar_lea.vmem %s16, %s564
      %p566 = scmp.lt.s32.totalorder %s29, 1
      %s567 = scalar_select %p566, %s29, 1
      %s568 = smul.addr %s567, 8
      %s569 = scalar_lea.vmem %s17, %s568
      %v571 = vld [vmem:[%s556] ss:$2 sm:$0xff]
      %v572 = vpack.c.bf16 %v571, %v571
      %v573 = vld [vmem:[%s1] sm:$0xf]
      %v574 = vld [vmem:[%s1 + $0x4] sm:$0xf]
      %v575 = vld [vmem:[%s1 + $0x8] sm:$0xf]
      %v576 = vld [vmem:[%s1 + $0xc] sm:$0xf]
      %v577 = vld [vmem:[%s1 + $0x10] sm:$0xf]
      %v578 = vld [vmem:[%s1 + $0x14] sm:$0xf]
      %v579 = vld [vmem:[%s1 + $0x18] sm:$0xf]
      %v580 = vld [vmem:[%s1 + $0x1c] sm:$0xf]
      %s581 = scalar_lea.vmem %s556, 1
      %v582 = vld [vmem:[%s581] ss:$2 sm:$0xff]
      %v583 = vpack.c.bf16 %v582, %v582
      %s584 = scalar_lea.vmem %s1, 32
      %v585 = vld [vmem:[%s584] sm:$0xf]
      %v586 = vld [vmem:[%s584 + $0x4] sm:$0xf]
      %v587 = vld [vmem:[%s584 + $0x8] sm:$0xf]
      %v588 = vld [vmem:[%s584 + $0xc] sm:$0xf]
      %v589 = vld [vmem:[%s584 + $0x10] sm:$0xf]
      %v590 = vld [vmem:[%s584 + $0x14] sm:$0xf]
      %v591 = vld [vmem:[%s584 + $0x18] sm:$0xf]
      %v592 = vld [vmem:[%s584 + $0x1c] sm:$0xf]
      %v601 = vunpack.c.l.b16 %v585
      %v602 = vunpack.c.l.b16 %v586
      %v603 = vunpack.c.l.b16 %v587
      %v604 = vunpack.c.l.b16 %v588
      %v605 = vunpack.c.l.b16 %v589
      %v606 = vunpack.c.l.b16 %v590
      %v607 = vunpack.c.l.b16 %v591
      %v608 = vunpack.c.l.b16 %v592
      %v609 = vpack.c.b16 %v602, %v601
      %v610 = vpack.c.b16 %v604, %v603
      %v611 = vpack.c.b16 %v606, %v605
      %v612 = vpack.c.b16 %v608, %v607
      %vm617 = vcmask 523264
      %v619 = vsel %vm617, %v583, 0
      %621 = vmatprep.subr.bf16.mxu0 0
      %622 = vmatpush1.bf16.msra.mxu0 0
      %623 = vmatprep.subr.bf16.mxu0 0
      %624 = vmatpush1.bf16.msra.mxu0 0
      %625 = vmatprep.subr.bf16.mxu0 0
      %626 = vmatpush1.bf16.msra.mxu0 0
      %627 = vmatprep.subr.bf16.mxu0 0
      %628 = vmatpush1.bf16.msra.mxu0 0
      %629 = vmatprep.subr.bf16.mxu0 0
      %630 = vmatpush1.bf16.msra.mxu0 %v612
      %631 = vmatprep.subr.bf16.mxu0 0
      %632 = vmatpush1.bf16.msra.mxu0 %v611
      %633 = vmatprep.subr.bf16.mxu0 0
      %634 = vmatpush1.bf16.msra.mxu0 %v610
      %635 = vmatprep.subr.bf16.mxu0 0
      %636 = vmatpush1.bf16.msra.mxu0 %v609
      %637 = vmatprep.subr.bf16.mxu0 0
      %638 = vmatpush2.bf16.msra.mxu0 0
      %639 = vmatprep.subr.bf16.mxu0 0
      %640 = vmatpush2.bf16.msra.mxu0 0
      %641 = vmatprep.subr.bf16.mxu0 0
      %642 = vmatpush2.bf16.msra.mxu0 0
      %643 = vmatprep.subr.bf16.mxu0 0
      %644 = vmatpush2.bf16.msra.mxu0 0
      %645 = vmatprep.subr.bf16.mxu0 0
      %646 = vmatpush2.bf16.msra.mxu0 0
      %647 = vmatprep.subr.bf16.mxu0 0
      %648 = vmatpush2.bf16.msra.mxu0 0
      %649 = vmatprep.subr.bf16.mxu0 0
      %650 = vmatpush2.bf16.msra.mxu0 0
      %651 = vmatprep.subr.bf16.mxu0 0
      %652 = vmatpush2.bf16.msra.mxu0 0
      %653 = vmatprep.mubr.bf16.mxu0 0
      %654 = vmatmul.mubr.bf16.gmra.mxu0 %v619
      %v655 = vpop.f32.mrf.mxu0
      %v656 = vadd.f32 0.0, %v655
      %v657 = vpop.f32.mrf.mxu0
      %v658 = vpop.f32.mrf.mxu0
      %v659 = vpop.f32.mrf.mxu0
      %660 = vdwg.mxu0
      %v669 = vunpack.c.l.b16 %v573
      %v670 = vunpack.c.l.b16 %v574
      %v671 = vunpack.c.l.b16 %v575
      %v672 = vunpack.c.l.b16 %v576
      %v673 = vunpack.c.l.b16 %v577
      %v674 = vunpack.c.l.b16 %v578
      %v675 = vunpack.c.l.b16 %v579
      %v676 = vunpack.c.l.b16 %v580
      %v677 = vpack.c.b16 %v670, %v669
      %v678 = vpack.c.b16 %v672, %v671
      %v679 = vpack.c.b16 %v674, %v673
      %v680 = vpack.c.b16 %v676, %v675
      %v686 = vsel %vm617, %v572, 0
      %688 = vmatprep.subr.bf16.mxu0 0
      %689 = vmatpush1.bf16.msra.mxu0 0
      %690 = vmatprep.subr.bf16.mxu0 0
      %691 = vmatpush1.bf16.msra.mxu0 0
      %692 = vmatprep.subr.bf16.mxu0 0
      %693 = vmatpush1.bf16.msra.mxu0 0
      %694 = vmatprep.subr.bf16.mxu0 0
      %695 = vmatpush1.bf16.msra.mxu0 0
      %696 = vmatprep.subr.bf16.mxu0 0
      %697 = vmatpush1.bf16.msra.mxu0 %v680
      %698 = vmatprep.subr.bf16.mxu0 0
      %699 = vmatpush1.bf16.msra.mxu0 %v679
      %700 = vmatprep.subr.bf16.mxu0 0
      %701 = vmatpush1.bf16.msra.mxu0 %v678
      %702 = vmatprep.subr.bf16.mxu0 0
      %703 = vmatpush1.bf16.msra.mxu0 %v677
      %704 = vmatprep.subr.bf16.mxu0 0
      %705 = vmatpush2.bf16.msra.mxu0 0
      %706 = vmatprep.subr.bf16.mxu0 0
      %707 = vmatpush2.bf16.msra.mxu0 0
      %708 = vmatprep.subr.bf16.mxu0 0
      %709 = vmatpush2.bf16.msra.mxu0 0
      %710 = vmatprep.subr.bf16.mxu0 0
      %711 = vmatpush2.bf16.msra.mxu0 0
      %712 = vmatprep.subr.bf16.mxu0 0
      %713 = vmatpush2.bf16.msra.mxu0 0
      %714 = vmatprep.subr.bf16.mxu0 0
      %715 = vmatpush2.bf16.msra.mxu0 0
      %716 = vmatprep.subr.bf16.mxu0 0
      %717 = vmatpush2.bf16.msra.mxu0 0
      %718 = vmatprep.subr.bf16.mxu0 0
      %719 = vmatpush2.bf16.msra.mxu0 0
      %720 = vmatprep.mubr.bf16.mxu0 0
      %721 = vmatmul.mubr.bf16.gmra.mxu0 %v686
      %v722 = vpop.f32.mrf.mxu0
      %v723 = vadd.f32 %v656, %v722
      %v724 = vpop.f32.mrf.mxu0
      %v725 = vpop.f32.mrf.mxu0
      %v726 = vpop.f32.mrf.mxu0
      %727 = vdwg.mxu0
      %s728 = scalar_lea.vmem %s556, 2
      %v729 = vld [vmem:[%s728] ss:$2 sm:$0xff]
      %v730 = vpack.c.bf16 %v729, %v729
      %s731 = scalar_lea.vmem %s1, 64
      %v732 = vld [vmem:[%s731] sm:$0xf]
      %v733 = vld [vmem:[%s731 + $0x4] sm:$0xf]
      %v734 = vld [vmem:[%s731 + $0x8] sm:$0xf]
      %v735 = vld [vmem:[%s731 + $0xc] sm:$0xf]
      %v736 = vld [vmem:[%s731 + $0x10] sm:$0xf]
      %v737 = vld [vmem:[%s731 + $0x14] sm:$0xf]
      %v738 = vld [vmem:[%s731 + $0x18] sm:$0xf]
      %v739 = vld [vmem:[%s731 + $0x1c] sm:$0xf]
      %v748 = vunpack.c.l.b16 %v732
      %v749 = vunpack.c.l.b16 %v733
      %v750 = vunpack.c.l.b16 %v734
      %v751 = vunpack.c.l.b16 %v735
      %v752 = vunpack.c.l.b16 %v736
      %v753 = vunpack.c.l.b16 %v737
      %v754 = vunpack.c.l.b16 %v738
      %v755 = vunpack.c.l.b16 %v739
      %v756 = vpack.c.b16 %v749, %v748
      %v757 = vpack.c.b16 %v751, %v750
      %v758 = vpack.c.b16 %v753, %v752
      %v759 = vpack.c.b16 %v755, %v754
      %v765 = vsel %vm617, %v730, 0
      %767 = vmatprep.subr.bf16.mxu0 0
      %768 = vmatpush1.bf16.msra.mxu0 0
      %769 = vmatprep.subr.bf16.mxu0 0
      %770 = vmatpush1.bf16.msra.mxu0 0
      %771 = vmatprep.subr.bf16.mxu0 0
      %772 = vmatpush1.bf16.msra.mxu0 0
      %773 = vmatprep.subr.bf16.mxu0 0
      %774 = vmatpush1.bf16.msra.mxu0 0
      %775 = vmatprep.subr.bf16.mxu0 0
      %776 = vmatpush1.bf16.msra.mxu0 %v759
      %777 = vmatprep.subr.bf16.mxu0 0
      %778 = vmatpush1.bf16.msra.mxu0 %v758
      %779 = vmatprep.subr.bf16.mxu0 0
      %780 = vmatpush1.bf16.msra.mxu0 %v757
      %781 = vmatprep.subr.bf16.mxu0 0
      %782 = vmatpush1.bf16.msra.mxu0 %v756
      %783 = vmatprep.subr.bf16.mxu0 0
      %784 = vmatpush2.bf16.msra.mxu0 0
      %785 = vmatprep.subr.bf16.mxu0 0
      %786 = vmatpush2.bf16.msra.mxu0 0
      %787 = vmatprep.subr.bf16.mxu0 0
      %788 = vmatpush2.bf16.msra.mxu0 0
      %789 = vmatprep.subr.bf16.mxu0 0
      %790 = vmatpush2.bf16.msra.mxu0 0
      %791 = vmatprep.subr.bf16.mxu0 0
      %792 = vmatpush2.bf16.msra.mxu0 0
      %793 = vmatprep.subr.bf16.mxu0 0
      %794 = vmatpush2.bf16.msra.mxu0 0
      %795 = vmatprep.subr.bf16.mxu0 0
      %796 = vmatpush2.bf16.msra.mxu0 0
      %797 = vmatprep.subr.bf16.mxu0 0
      %798 = vmatpush2.bf16.msra.mxu0 0
      %799 = vmatprep.mubr.bf16.mxu0 0
      %800 = vmatmul.mubr.bf16.gmra.mxu0 %v765
      %v801 = vpop.f32.mrf.mxu0
      %v802 = vadd.f32 0.0, %v801
      %v803 = vpop.f32.mrf.mxu0
      %v804 = vpop.f32.mrf.mxu0
      %v805 = vpop.f32.mrf.mxu0
      %806 = vdwg.mxu0
      %v807 = vadd.f32 %v723, %v802
      %v808 = vld [vmem:[%s2] sm:$0x1]
      %v810 = vlaneseq
      %v811 = vshrl.u32 %v810, 7
      %v812 = vsub.s32 0, %v811
      %v813 = vrot.slane %v808, %v812
      %v815 = vadd.f32 %v807, %v813
      %v816 = vmax.f32 %v815, 0.0
      %vm817 = vcmask 516096
      %818 = vst.msk [vmem:[#allocation2] sm:$0x1] %vm817, 0.0
      %819 = vst.msk [vmem:[#allocation2 + $0x9] sm:$0x1] %vm817, 0.0
      %820 = vst.msk [vmem:[#allocation2 + $0x1] sm:$0xff] %vm617, %v816
      %v821 = vld [vmem:[#allocation2] sm:$0xff]
      %v822 = vpack.c.bf16 %v821, %v821
      %v823 = vld [vmem:[%s3] sm:$0xf]
      %v824 = vld [vmem:[%s3 + $0x4] sm:$0xf]
      %v825 = vld [vmem:[%s3 + $0x8] sm:$0xf]
      %v826 = vld [vmem:[%s3 + $0xc] sm:$0xf]
      %v827 = vld [vmem:[%s3 + $0x10] sm:$0xf]
      %v828 = vld [vmem:[%s3 + $0x14] sm:$0xf]
      %v829 = vld [vmem:[%s3 + $0x18] sm:$0xf]
      %v830 = vld [vmem:[%s3 + $0x1c] sm:$0xf]
      %v831 = vld [vmem:[#allocation2 + $0x1] sm:$0xff]
      %v832 = vpack.c.bf16 %v831, %v831
      %s833 = scalar_lea.vmem %s3, 32
      %v834 = vld [vmem:[%s833] sm:$0xf]
      %v835 = vld [vmem:[%s833 + $0x4] sm:$0xf]
      %v836 = vld [vmem:[%s833 + $0x8] sm:$0xf]
      %v837 = vld [vmem:[%s833 + $0xc] sm:$0xf]
      %v838 = vld [vmem:[%s833 + $0x10] sm:$0xf]
      %v839 = vld [vmem:[%s833 + $0x14] sm:$0xf]
      %v840 = vld [vmem:[%s833 + $0x18] sm:$0xf]
      %v841 = vld [vmem:[%s833 + $0x1c] sm:$0xf]
      %v850 = vunpack.c.l.b16 %v834
      %v851 = vunpack.c.l.b16 %v835
      %v852 = vunpack.c.l.b16 %v836
      %v853 = vunpack.c.l.b16 %v837
      %v854 = vunpack.c.l.b16 %v838
      %v855 = vunpack.c.l.b16 %v839
      %v856 = vunpack.c.l.b16 %v840
      %v857 = vunpack.c.l.b16 %v841
      %v858 = vpack.c.b16 %v851, %v850
      %v859 = vpack.c.b16 %v853, %v852
      %v860 = vpack.c.b16 %v855, %v854
      %v861 = vpack.c.b16 %v857, %v856
      %v867 = vsel %vm617, %v832, 0
      %869 = vmatprep.subr.bf16.mxu0 0
      %870 = vmatpush1.bf16.msra.mxu0 0
      %871 = vmatprep.subr.bf16.mxu0 0
      %872 = vmatpush1.bf16.msra.mxu0 0
      %873 = vmatprep.subr.bf16.mxu0 0
      %874 = vmatpush1.bf16.msra.mxu0 0
      %875 = vmatprep.subr.bf16.mxu0 0
      %876 = vmatpush1.bf16.msra.mxu0 0
      %877 = vmatprep.subr.bf16.mxu0 0
      %878 = vmatpush1.bf16.msra.mxu0 %v861
      %879 = vmatprep.subr.bf16.mxu0 0
      %880 = vmatpush1.bf16.msra.mxu0 %v860
      %881 = vmatprep.subr.bf16.mxu0 0
      %882 = vmatpush1.bf16.msra.mxu0 %v859
      %883 = vmatprep.subr.bf16.mxu0 0
      %884 = vmatpush1.bf16.msra.mxu0 %v858
      %885 = vmatprep.subr.bf16.mxu0 0
      %886 = vmatpush2.bf16.msra.mxu0 0
      %887 = vmatprep.subr.bf16.mxu0 0
      %888 = vmatpush2.bf16.msra.mxu0 0
      %889 = vmatprep.subr.bf16.mxu0 0
      %890 = vmatpush2.bf16.msra.mxu0 0
      %891 = vmatprep.subr.bf16.mxu0 0
      %892 = vmatpush2.bf16.msra.mxu0 0
      %893 = vmatprep.subr.bf16.mxu0 0
      %894 = vmatpush2.bf16.msra.mxu0 0
      %895 = vmatprep.subr.bf16.mxu0 0
      %896 = vmatpush2.bf16.msra.mxu0 0
      %897 = vmatprep.subr.bf16.mxu0 0
      %898 = vmatpush2.bf16.msra.mxu0 0
      %899 = vmatprep.subr.bf16.mxu0 0
      %900 = vmatpush2.bf16.msra.mxu0 0
      %901 = vmatprep.mubr.bf16.mxu0 0
      %902 = vmatmul.mubr.bf16.gmra.mxu0 %v867
      %v903 = vpop.f32.mrf.mxu0
      %v904 = vadd.f32 0.0, %v903
      %v905 = vpop.f32.mrf.mxu0
      %v906 = vpop.f32.mrf.mxu0
      %v907 = vpop.f32.mrf.mxu0
      %908 = vdwg.mxu0
      %v917 = vunpack.c.l.b16 %v823
      %v918 = vunpack.c.l.b16 %v824
      %v919 = vunpack.c.l.b16 %v825
      %v920 = vunpack.c.l.b16 %v826
      %v921 = vunpack.c.l.b16 %v827
      %v922 = vunpack.c.l.b16 %v828
      %v923 = vunpack.c.l.b16 %v829
      %v924 = vunpack.c.l.b16 %v830
      %v925 = vpack.c.b16 %v918, %v917
      %v926 = vpack.c.b16 %v920, %v919
      %v927 = vpack.c.b16 %v922, %v921
      %v928 = vpack.c.b16 %v924, %v923
      %v934 = vsel %vm617, %v822, 0
      %936 = vmatprep.subr.bf16.mxu0 0
      %937 = vmatpush1.bf16.msra.mxu0 0
      %938 = vmatprep.subr.bf16.mxu0 0
      %939 = vmatpush1.bf16.msra.mxu0 0
      %940 = vmatprep.subr.bf16.mxu0 0
      %941 = vmatpush1.bf16.msra.mxu0 0
      %942 = vmatprep.subr.bf16.mxu0 0
      %943 = vmatpush1.bf16.msra.mxu0 0
      %944 = vmatprep.subr.bf16.mxu0 0
      %945 = vmatpush1.bf16.msra.mxu0 %v928
      %946 = vmatprep.subr.bf16.mxu0 0
      %947 = vmatpush1.bf16.msra.mxu0 %v927
      %948 = vmatprep.subr.bf16.mxu0 0
      %949 = vmatpush1.bf16.msra.mxu0 %v926
      %950 = vmatprep.subr.bf16.mxu0 0
      %951 = vmatpush1.bf16.msra.mxu0 %v925
      %952 = vmatprep.subr.bf16.mxu0 0
      %953 = vmatpush2.bf16.msra.mxu0 0
      %954 = vmatprep.subr.bf16.mxu0 0
      %955 = vmatpush2.bf16.msra.mxu0 0
      %956 = vmatprep.subr.bf16.mxu0 0
      %957 = vmatpush2.bf16.msra.mxu0 0
      %958 = vmatprep.subr.bf16.mxu0 0
      %959 = vmatpush2.bf16.msra.mxu0 0
      %960 = vmatprep.subr.bf16.mxu0 0
      %961 = vmatpush2.bf16.msra.mxu0 0
      %962 = vmatprep.subr.bf16.mxu0 0
      %963 = vmatpush2.bf16.msra.mxu0 0
      %964 = vmatprep.subr.bf16.mxu0 0
      %965 = vmatpush2.bf16.msra.mxu0 0
      %966 = vmatprep.subr.bf16.mxu0 0
      %967 = vmatpush2.bf16.msra.mxu0 0
      %968 = vmatprep.mubr.bf16.mxu0 0
      %969 = vmatmul.mubr.bf16.gmra.mxu0 %v934
      %v970 = vpop.f32.mrf.mxu0
      %v971 = vadd.f32 %v904, %v970
      %v972 = vpop.f32.mrf.mxu0
      %v973 = vpop.f32.mrf.mxu0
      %v974 = vpop.f32.mrf.mxu0
      %975 = vdwg.mxu0
      %v976 = vld [vmem:[#allocation2 + $0x2] sm:$0xff]
      %v977 = vpack.c.bf16 %v976, %v976
      %s978 = scalar_lea.vmem %s3, 64
      %v979 = vld [vmem:[%s978] sm:$0xf]
      %v980 = vld [vmem:[%s978 + $0x4] sm:$0xf]
      %v981 = vld [vmem:[%s978 + $0x8] sm:$0xf]
      %v982 = vld [vmem:[%s978 + $0xc] sm:$0xf]
      %v983 = vld [vmem:[%s978 + $0x10] sm:$0xf]
      %v984 = vld [vmem:[%s978 + $0x14] sm:$0xf]
      %v985 = vld [vmem:[%s978 + $0x18] sm:$0xf]
      %v986 = vld [vmem:[%s978 + $0x1c] sm:$0xf]
      %v995 = vunpack.c.l.b16 %v979
      %v996 = vunpack.c.l.b16 %v980
      %v997 = vunpack.c.l.b16 %v981
      %v998 = vunpack.c.l.b16 %v982
      %v999 = vunpack.c.l.b16 %v983
      %v1000 = vunpack.c.l.b16 %v984
      %v1001 = vunpack.c.l.b16 %v985
      %v1002 = vunpack.c.l.b16 %v986
      %v1003 = vpack.c.b16 %v996, %v995
      %v1004 = vpack.c.b16 %v998, %v997
      %v1005 = vpack.c.b16 %v1000, %v999
      %v1006 = vpack.c.b16 %v1002, %v1001
      %v1012 = vsel %vm617, %v977, 0
      %1014 = vmatprep.subr.bf16.mxu0 0
      %1015 = vmatpush1.bf16.msra.mxu0 0
      %1016 = vmatprep.subr.bf16.mxu0 0
      %1017 = vmatpush1.bf16.msra.mxu0 0
      %1018 = vmatprep.subr.bf16.mxu0 0
      %1019 = vmatpush1.bf16.msra.mxu0 0
      %1020 = vmatprep.subr.bf16.mxu0 0
      %1021 = vmatpush1.bf16.msra.mxu0 0
      %1022 = vmatprep.subr.bf16.mxu0 0
      %1023 = vmatpush1.bf16.msra.mxu0 %v1006
      %1024 = vmatprep.subr.bf16.mxu0 0
      %1025 = vmatpush1.bf16.msra.mxu0 %v1005
      %1026 = vmatprep.subr.bf16.mxu0 0
      %1027 = vmatpush1.bf16.msra.mxu0 %v1004
      %1028 = vmatprep.subr.bf16.mxu0 0
      %1029 = vmatpush1.bf16.msra.mxu0 %v1003
      %1030 = vmatprep.subr.bf16.mxu0 0
      %1031 = vmatpush2.bf16.msra.mxu0 0
      %1032 = vmatprep.subr.bf16.mxu0 0
      %1033 = vmatpush2.bf16.msra.mxu0 0
      %1034 = vmatprep.subr.bf16.mxu0 0
      %1035 = vmatpush2.bf16.msra.mxu0 0
      %1036 = vmatprep.subr.bf16.mxu0 0
      %1037 = vmatpush2.bf16.msra.mxu0 0
      %1038 = vmatprep.subr.bf16.mxu0 0
      %1039 = vmatpush2.bf16.msra.mxu0 0
      %1040 = vmatprep.subr.bf16.mxu0 0
      %1041 = vmatpush2.bf16.msra.mxu0 0
      %1042 = vmatprep.subr.bf16.mxu0 0
      %1043 = vmatpush2.bf16.msra.mxu0 0
      %1044 = vmatprep.subr.bf16.mxu0 0
      %1045 = vmatpush2.bf16.msra.mxu0 0
      %1046 = vmatprep.mubr.bf16.mxu0 0
      %1047 = vmatmul.mubr.bf16.gmra.mxu0 %v1012
      %v1048 = vpop.f32.mrf.mxu0
      %v1049 = vadd.f32 0.0, %v1048
      %v1050 = vpop.f32.mrf.mxu0
      %v1051 = vpop.f32.mrf.mxu0
      %v1052 = vpop.f32.mrf.mxu0
      %1053 = vdwg.mxu0
      %v1054 = vadd.f32 %v971, %v1049
      %v1055 = vld [vmem:[%s4] sm:$0x1]
      %v1057 = vlaneseq
      %v1058 = vshrl.u32 %v1057, 7
      %v1059 = vsub.s32 0, %v1058
      %v1060 = vrot.slane %v1055, %v1059
      %v1062 = vadd.f32 %v1054, %v1060
      %v1063 = vmax.f32 %v1062, 0.0
      %1064 = vst.msk [vmem:[%s565] sm:$0xff] %vm617, %v1063
      %1065 = vst.msk [vmem:[#allocation3] sm:$0x1] %vm817, 0.0
      %1066 = vst.msk [vmem:[#allocation3 + $0x9] sm:$0x1] %vm817, 0.0
      %1067 = vst.msk [vmem:[#allocation3 + $0x1] sm:$0xff] %vm617, %v1063
      %v1068 = vld [vmem:[#allocation3] ss:$2 sm:$0xf]
      %v1069 = vpack.c.bf16 %v1068, %v1068
      %v1070 = vld [vmem:[%s5] sm:$0xf]
      %v1071 = vld [vmem:[%s5 + $0x4] sm:$0xf]
      %v1072 = vld [vmem:[%s5 + $0x8] sm:$0xf]
      %v1073 = vld [vmem:[%s5 + $0xc] sm:$0xf]
      %v1074 = vld [vmem:[%s5 + $0x10] sm:$0xf]
      %v1075 = vld [vmem:[%s5 + $0x14] sm:$0xf]
      %v1076 = vld [vmem:[%s5 + $0x18] sm:$0xf]
      %v1077 = vld [vmem:[%s5 + $0x1c] sm:$0xf]
      %s1078 = scalar_lea.vmem [#allocation3], 1
      %v1079 = vld [vmem:[%s1078] ss:$2 sm:$0xf]
      %v1080 = vpack.c.bf16 %v1079, %v1079
      %s1081 = scalar_lea.vmem %s5, 32
      %v1082 = vld [vmem:[%s1081] sm:$0xf]
      %v1083 = vld [vmem:[%s1081 + $0x4] sm:$0xf]
      %v1084 = vld [vmem:[%s1081 + $0x8] sm:$0xf]
      %v1085 = vld [vmem:[%s1081 + $0xc] sm:$0xf]
      %v1086 = vld [vmem:[%s1081 + $0x10] sm:$0xf]
      %v1087 = vld [vmem:[%s1081 + $0x14] sm:$0xf]
      %v1088 = vld [vmem:[%s1081 + $0x18] sm:$0xf]
      %v1089 = vld [vmem:[%s1081 + $0x1c] sm:$0xf]
      %v1098 = vunpack.c.l.b16 %v1082
      %v1099 = vunpack.c.l.b16 %v1083
      %v1100 = vunpack.c.l.b16 %v1084
      %v1101 = vunpack.c.l.b16 %v1085
      %v1102 = vunpack.c.l.b16 %v1086
      %v1103 = vunpack.c.l.b16 %v1087
      %v1104 = vunpack.c.l.b16 %v1088
      %v1105 = vunpack.c.l.b16 %v1089
      %v1106 = vpack.c.b16 %v1099, %v1098
      %v1107 = vpack.c.b16 %v1101, %v1100
      %v1108 = vpack.c.b16 %v1103, %v1102
      %v1109 = vpack.c.b16 %v1105, %v1104
      %v1115 = vsel %vm617, %v1080, 0
      %1117 = vmatprep.subr.bf16.mxu0 0
      %1118 = vmatpush1.bf16.msra.mxu0 0
      %1119 = vmatprep.subr.bf16.mxu0 0
      %1120 = vmatpush1.bf16.msra.mxu0 0
      %1121 = vmatprep.subr.bf16.mxu0 0
      %1122 = vmatpush1.bf16.msra.mxu0 0
      %1123 = vmatprep.subr.bf16.mxu0 0
      %1124 = vmatpush1.bf16.msra.mxu0 0
      %1125 = vmatprep.subr.bf16.mxu0 0
      %1126 = vmatpush1.bf16.msra.mxu0 %v1109
      %1127 = vmatprep.subr.bf16.mxu0 0
      %1128 = vmatpush1.bf16.msra.mxu0 %v1108
      %1129 = vmatprep.subr.bf16.mxu0 0
      %1130 = vmatpush1.bf16.msra.mxu0 %v1107
      %1131 = vmatprep.subr.bf16.mxu0 0
      %1132 = vmatpush1.bf16.msra.mxu0 %v1106
      %1133 = vmatprep.subr.bf16.mxu0 0
      %1134 = vmatpush2.bf16.msra.mxu0 0
      %1135 = vmatprep.subr.bf16.mxu0 0
      %1136 = vmatpush2.bf16.msra.mxu0 0
      %1137 = vmatprep.subr.bf16.mxu0 0
      %1138 = vmatpush2.bf16.msra.mxu0 0
      %1139 = vmatprep.subr.bf16.mxu0 0
      %1140 = vmatpush2.bf16.msra.mxu0 0
      %1141 = vmatprep.subr.bf16.mxu0 0
      %1142 = vmatpush2.bf16.msra.mxu0 0
      %1143 = vmatprep.subr.bf16.mxu0 0
      %1144 = vmatpush2.bf16.msra.mxu0 0
      %1145 = vmatprep.subr.bf16.mxu0 0
      %1146 = vmatpush2.bf16.msra.mxu0 0
      %1147 = vmatprep.subr.bf16.mxu0 0
      %1148 = vmatpush2.bf16.msra.mxu0 0
      %1149 = vmatprep.mubr.bf16.mxu0 0
      %1150 = vmatmul.mubr.bf16.gmra.mxu0 %v1115
      %v1151 = vpop.f32.mrf.mxu0
      %v1152 = vadd.f32 0.0, %v1151
      %v1153 = vpop.f32.mrf.mxu0
      %v1154 = vpop.f32.mrf.mxu0
      %v1155 = vpop.f32.mrf.mxu0
      %1156 = vdwg.mxu0
      %v1165 = vunpack.c.l.b16 %v1070
      %v1166 = vunpack.c.l.b16 %v1071
      %v1167 = vunpack.c.l.b16 %v1072
      %v1168 = vunpack.c.l.b16 %v1073
      %v1169 = vunpack.c.l.b16 %v1074
      %v1170 = vunpack.c.l.b16 %v1075
      %v1171 = vunpack.c.l.b16 %v1076
      %v1172 = vunpack.c.l.b16 %v1077
      %v1173 = vpack.c.b16 %v1166, %v1165
      %v1174 = vpack.c.b16 %v1168, %v1167
      %v1175 = vpack.c.b16 %v1170, %v1169
      %v1176 = vpack.c.b16 %v1172, %v1171
      %v1182 = vsel %vm617, %v1069, 0
      %1184 = vmatprep.subr.bf16.mxu0 0
      %1185 = vmatpush1.bf16.msra.mxu0 0
      %1186 = vmatprep.subr.bf16.mxu0 0
      %1187 = vmatpush1.bf16.msra.mxu0 0
      %1188 = vmatprep.subr.bf16.mxu0 0
      %1189 = vmatpush1.bf16.msra.mxu0 0
      %1190 = vmatprep.subr.bf16.mxu0 0
      %1191 = vmatpush1.bf16.msra.mxu0 0
      %1192 = vmatprep.subr.bf16.mxu0 0
      %1193 = vmatpush1.bf16.msra.mxu0 %v1176
      %1194 = vmatprep.subr.bf16.mxu0 0
      %1195 = vmatpush1.bf16.msra.mxu0 %v1175
      %1196 = vmatprep.subr.bf16.mxu0 0
      %1197 = vmatpush1.bf16.msra.mxu0 %v1174
      %1198 = vmatprep.subr.bf16.mxu0 0
      %1199 = vmatpush1.bf16.msra.mxu0 %v1173
      %1200 = vmatprep.subr.bf16.mxu0 0
      %1201 = vmatpush2.bf16.msra.mxu0 0
      %1202 = vmatprep.subr.bf16.mxu0 0
      %1203 = vmatpush2.bf16.msra.mxu0 0
      %1204 = vmatprep.subr.bf16.mxu0 0
      %1205 = vmatpush2.bf16.msra.mxu0 0
      %1206 = vmatprep.subr.bf16.mxu0 0
      %1207 = vmatpush2.bf16.msra.mxu0 0
      %1208 = vmatprep.subr.bf16.mxu0 0
      %1209 = vmatpush2.bf16.msra.mxu0 0
      %1210 = vmatprep.subr.bf16.mxu0 0
      %1211 = vmatpush2.bf16.msra.mxu0 0
      %1212 = vmatprep.subr.bf16.mxu0 0
      %1213 = vmatpush2.bf16.msra.mxu0 0
      %1214 = vmatprep.subr.bf16.mxu0 0
      %1215 = vmatpush2.bf16.msra.mxu0 0
      %1216 = vmatprep.mubr.bf16.mxu0 0
      %1217 = vmatmul.mubr.bf16.gmra.mxu0 %v1182
      %v1218 = vpop.f32.mrf.mxu0
      %v1219 = vadd.f32 %v1152, %v1218
      %v1220 = vpop.f32.mrf.mxu0
      %v1221 = vpop.f32.mrf.mxu0
      %v1222 = vpop.f32.mrf.mxu0
      %1223 = vdwg.mxu0
      %s1224 = scalar_lea.vmem [#allocation3], 2
      %v1225 = vld [vmem:[%s1224] ss:$2 sm:$0xf]
      %v1226 = vpack.c.bf16 %v1225, %v1225
      %s1227 = scalar_lea.vmem %s5, 64
      %v1228 = vld [vmem:[%s1227] sm:$0xf]
      %v1229 = vld [vmem:[%s1227 + $0x4] sm:$0xf]
      %v1230 = vld [vmem:[%s1227 + $0x8] sm:$0xf]
      %v1231 = vld [vmem:[%s1227 + $0xc] sm:$0xf]
      %v1232 = vld [vmem:[%s1227 + $0x10] sm:$0xf]
      %v1233 = vld [vmem:[%s1227 + $0x14] sm:$0xf]
      %v1234 = vld [vmem:[%s1227 + $0x18] sm:$0xf]
      %v1235 = vld [vmem:[%s1227 + $0x1c] sm:$0xf]
      %v1244 = vunpack.c.l.b16 %v1228
      %v1245 = vunpack.c.l.b16 %v1229
      %v1246 = vunpack.c.l.b16 %v1230
      %v1247 = vunpack.c.l.b16 %v1231
      %v1248 = vunpack.c.l.b16 %v1232
      %v1249 = vunpack.c.l.b16 %v1233
      %v1250 = vunpack.c.l.b16 %v1234
      %v1251 = vunpack.c.l.b16 %v1235
      %v1252 = vpack.c.b16 %v1245, %v1244
      %v1253 = vpack.c.b16 %v1247, %v1246
      %v1254 = vpack.c.b16 %v1249, %v1248
      %v1255 = vpack.c.b16 %v1251, %v1250
      %v1261 = vsel %vm617, %v1226, 0
      %1263 = vmatprep.subr.bf16.mxu0 0
      %1264 = vmatpush1.bf16.msra.mxu0 0
      %1265 = vmatprep.subr.bf16.mxu0 0
      %1266 = vmatpush1.bf16.msra.mxu0 0
      %1267 = vmatprep.subr.bf16.mxu0 0
      %1268 = vmatpush1.bf16.msra.mxu0 0
      %1269 = vmatprep.subr.bf16.mxu0 0
      %1270 = vmatpush1.bf16.msra.mxu0 0
      %1271 = vmatprep.subr.bf16.mxu0 0
      %1272 = vmatpush1.bf16.msra.mxu0 %v1255
      %1273 = vmatprep.subr.bf16.mxu0 0
      %1274 = vmatpush1.bf16.msra.mxu0 %v1254
      %1275 = vmatprep.subr.bf16.mxu0 0
      %1276 = vmatpush1.bf16.msra.mxu0 %v1253
      %1277 = vmatprep.subr.bf16.mxu0 0
      %1278 = vmatpush1.bf16.msra.mxu0 %v1252
      %1279 = vmatprep.subr.bf16.mxu0 0
      %1280 = vmatpush2.bf16.msra.mxu0 0
      %1281 = vmatprep.subr.bf16.mxu0 0
      %1282 = vmatpush2.bf16.msra.mxu0 0
      %1283 = vmatprep.subr.bf16.mxu0 0
      %1284 = vmatpush2.bf16.msra.mxu0 0
      %1285 = vmatprep.subr.bf16.mxu0 0
      %1286 = vmatpush2.bf16.msra.mxu0 0
      %1287 = vmatprep.subr.bf16.mxu0 0
      %1288 = vmatpush2.bf16.msra.mxu0 0
      %1289 = vmatprep.subr.bf16.mxu0 0
      %1290 = vmatpush2.bf16.msra.mxu0 0
      %1291 = vmatprep.subr.bf16.mxu0 0
      %1292 = vmatpush2.bf16.msra.mxu0 0
      %1293 = vmatprep.subr.bf16.mxu0 0
      %1294 = vmatpush2.bf16.msra.mxu0 0
      %1295 = vmatprep.mubr.bf16.mxu0 0
      %1296 = vmatmul.mubr.bf16.gmra.mxu0 %v1261
      %v1297 = vpop.f32.mrf.mxu0
      %v1298 = vadd.f32 0.0, %v1297
      %v1299 = vpop.f32.mrf.mxu0
      %v1300 = vpop.f32.mrf.mxu0
      %v1301 = vpop.f32.mrf.mxu0
      %1302 = vdwg.mxu0
      %v1303 = vadd.f32 %v1219, %v1298
      %v1304 = vld [vmem:[%s6] sm:$0x1]
      %v1306 = vlaneseq
      %v1307 = vshrl.u32 %v1306, 7
      %v1308 = vsub.s32 0, %v1307
      %v1309 = vrot.slane %v1304, %v1308
      %v1311 = vadd.f32 %v1303, %v1309
      %v1312 = vmax.f32 %v1311, 0.0
      %vm1313 = vcmask 253952
      %1314 = vst.msk [vmem:[#allocation4] sm:$0x1] %vm1313, 0.0
      %1315 = vst.msk [vmem:[#allocation4 + $0x5] sm:$0x1] %vm1313, 0.0
      %vm1316 = vcmask 257024
      %1317 = vst.msk [vmem:[#allocation4 + $0x1] sm:$0xf] %vm1316, %v1312
      %v1318 = vld [vmem:[#allocation4] sm:$0xf]
      %v1319 = vpack.c.bf16 %v1318, %v1318
      %v1320 = vld [vmem:[%s7] sm:$0xf]
      %v1321 = vld [vmem:[%s7 + $0x4] sm:$0xf]
      %v1322 = vld [vmem:[%s7 + $0x8] sm:$0xf]
      %v1323 = vld [vmem:[%s7 + $0xc] sm:$0xf]
      %v1324 = vld [vmem:[#allocation4 + $0x1] sm:$0xf]
      %v1325 = vpack.c.bf16 %v1324, %v1324
      %s1326 = scalar_lea.vmem %s7, 16
      %v1327 = vld [vmem:[%s1326] sm:$0xf]
      %v1328 = vld [vmem:[%s1326 + $0x4] sm:$0xf]
      %v1329 = vld [vmem:[%s1326 + $0x8] sm:$0xf]
      %v1330 = vld [vmem:[%s1326 + $0xc] sm:$0xf]
      %v1335 = vunpack.c.l.b16 %v1327
      %v1336 = vunpack.c.l.b16 %v1328
      %v1337 = vunpack.c.l.b16 %v1329
      %v1338 = vunpack.c.l.b16 %v1330
      %v1339 = vpack.c.b16 %v1336, %v1335
      %v1340 = vpack.c.b16 %v1338, %v1337
      %vm1343 = vcmask 261120
      %v1345 = vsel %vm1343, %v1325, 0
      %1347 = vmatprep.subr.bf16.mxu0 0
      %1348 = vmatpush1.bf16.msra.mxu0 0
      %1349 = vmatprep.subr.bf16.mxu0 0
      %1350 = vmatpush1.bf16.msra.mxu0 0
      %1351 = vmatprep.subr.bf16.mxu0 0
      %1352 = vmatpush1.bf16.msra.mxu0 0
      %1353 = vmatprep.subr.bf16.mxu0 0
      %1354 = vmatpush1.bf16.msra.mxu0 0
      %1355 = vmatprep.subr.bf16.mxu0 0
      %1356 = vmatpush1.bf16.msra.mxu0 0
      %1357 = vmatprep.subr.bf16.mxu0 0
      %1358 = vmatpush1.bf16.msra.mxu0 0
      %1359 = vmatprep.subr.bf16.mxu0 0
      %1360 = vmatpush1.bf16.msra.mxu0 %v1340
      %1361 = vmatprep.subr.bf16.mxu0 0
      %1362 = vmatpush1.bf16.msra.mxu0 %v1339
      %1363 = vmatprep.subr.bf16.mxu0 0
      %1364 = vmatpush2.bf16.msra.mxu0 0
      %1365 = vmatprep.subr.bf16.mxu0 0
      %1366 = vmatpush2.bf16.msra.mxu0 0
      %1367 = vmatprep.subr.bf16.mxu0 0
      %1368 = vmatpush2.bf16.msra.mxu0 0
      %1369 = vmatprep.subr.bf16.mxu0 0
      %1370 = vmatpush2.bf16.msra.mxu0 0
      %1371 = vmatprep.subr.bf16.mxu0 0
      %1372 = vmatpush2.bf16.msra.mxu0 0
      %1373 = vmatprep.subr.bf16.mxu0 0
      %1374 = vmatpush2.bf16.msra.mxu0 0
      %1375 = vmatprep.subr.bf16.mxu0 0
      %1376 = vmatpush2.bf16.msra.mxu0 0
      %1377 = vmatprep.subr.bf16.mxu0 0
      %1378 = vmatpush2.bf16.msra.mxu0 0
      %1379 = vmatprep.mubr.bf16.mxu0 0
      %1380 = vmatmul.mubr.bf16.gmra.mxu0 %v1345
      %v1381 = vpop.f32.mrf.mxu0
      %v1382 = vadd.f32 0.0, %v1381
      %v1383 = vpop.f32.mrf.mxu0
      %v1384 = vpop.f32.mrf.mxu0
      %v1385 = vpop.f32.mrf.mxu0
      %1386 = vdwg.mxu0
      %v1391 = vunpack.c.l.b16 %v1320
      %v1392 = vunpack.c.l.b16 %v1321
      %v1393 = vunpack.c.l.b16 %v1322
      %v1394 = vunpack.c.l.b16 %v1323
      %v1395 = vpack.c.b16 %v1392, %v1391
      %v1396 = vpack.c.b16 %v1394, %v1393
      %v1400 = vsel %vm1343, %v1319, 0
      %1402 = vmatprep.subr.bf16.mxu0 0
      %1403 = vmatpush1.bf16.msra.mxu0 0
      %1404 = vmatprep.subr.bf16.mxu0 0
      %1405 = vmatpush1.bf16.msra.mxu0 0
      %1406 = vmatprep.subr.bf16.mxu0 0
      %1407 = vmatpush1.bf16.msra.mxu0 0
      %1408 = vmatprep.subr.bf16.mxu0 0
      %1409 = vmatpush1.bf16.msra.mxu0 0
      %1410 = vmatprep.subr.bf16.mxu0 0
      %1411 = vmatpush1.bf16.msra.mxu0 0
      %1412 = vmatprep.subr.bf16.mxu0 0
      %1413 = vmatpush1.bf16.msra.mxu0 0
      %1414 = vmatprep.subr.bf16.mxu0 0
      %1415 = vmatpush1.bf16.msra.mxu0 %v1396
      %1416 = vmatprep.subr.bf16.mxu0 0
      %1417 = vmatpush1.bf16.msra.mxu0 %v1395
      %1418 = vmatprep.subr.bf16.mxu0 0
      %1419 = vmatpush2.bf16.msra.mxu0 0
      %1420 = vmatprep.subr.bf16.mxu0 0
      %1421 = vmatpush2.bf16.msra.mxu0 0
      %1422 = vmatprep.subr.bf16.mxu0 0
      %1423 = vmatpush2.bf16.msra.mxu0 0
      %1424 = vmatprep.subr.bf16.mxu0 0
      %1425 = vmatpush2.bf16.msra.mxu0 0
      %1426 = vmatprep.subr.bf16.mxu0 0
      %1427 = vmatpush2.bf16.msra.mxu0 0
      %1428 = vmatprep.subr.bf16.mxu0 0
      %1429 = vmatpush2.bf16.msra.mxu0 0
      %1430 = vmatprep.subr.bf16.mxu0 0
      %1431 = vmatpush2.bf16.msra.mxu0 0
      %1432 = vmatprep.subr.bf16.mxu0 0
      %1433 = vmatpush2.bf16.msra.mxu0 0
      %1434 = vmatprep.mubr.bf16.mxu0 0
      %1435 = vmatmul.mubr.bf16.gmra.mxu0 %v1400
      %v1436 = vpop.f32.mrf.mxu0
      %v1437 = vadd.f32 %v1382, %v1436
      %v1438 = vpop.f32.mrf.mxu0
      %v1439 = vpop.f32.mrf.mxu0
      %v1440 = vpop.f32.mrf.mxu0
      %1441 = vdwg.mxu0
      %v1442 = vld [vmem:[#allocation4 + $0x2] sm:$0xf]
      %v1443 = vpack.c.bf16 %v1442, %v1442
      %s1444 = scalar_lea.vmem %s7, 32
      %v1445 = vld [vmem:[%s1444] sm:$0xf]
      %v1446 = vld [vmem:[%s1444 + $0x4] sm:$0xf]
      %v1447 = vld [vmem:[%s1444 + $0x8] sm:$0xf]
      %v1448 = vld [vmem:[%s1444 + $0xc] sm:$0xf]
      %v1453 = vunpack.c.l.b16 %v1445
      %v1454 = vunpack.c.l.b16 %v1446
      %v1455 = vunpack.c.l.b16 %v1447
      %v1456 = vunpack.c.l.b16 %v1448
      %v1457 = vpack.c.b16 %v1454, %v1453
      %v1458 = vpack.c.b16 %v1456, %v1455
      %v1462 = vsel %vm1343, %v1443, 0
      %1464 = vmatprep.subr.bf16.mxu0 0
      %1465 = vmatpush1.bf16.msra.mxu0 0
      %1466 = vmatprep.subr.bf16.mxu0 0
      %1467 = vmatpush1.bf16.msra.mxu0 0
      %1468 = vmatprep.subr.bf16.mxu0 0
      %1469 = vmatpush1.bf16.msra.mxu0 0
      %1470 = vmatprep.subr.bf16.mxu0 0
      %1471 = vmatpush1.bf16.msra.mxu0 0
      %1472 = vmatprep.subr.bf16.mxu0 0
      %1473 = vmatpush1.bf16.msra.mxu0 0
      %1474 = vmatprep.subr.bf16.mxu0 0
      %1475 = vmatpush1.bf16.msra.mxu0 0
      %1476 = vmatprep.subr.bf16.mxu0 0
      %1477 = vmatpush1.bf16.msra.mxu0 %v1458
      %1478 = vmatprep.subr.bf16.mxu0 0
      %1479 = vmatpush1.bf16.msra.mxu0 %v1457
      %1480 = vmatprep.subr.bf16.mxu0 0
      %1481 = vmatpush2.bf16.msra.mxu0 0
      %1482 = vmatprep.subr.bf16.mxu0 0
      %1483 = vmatpush2.bf16.msra.mxu0 0
      %1484 = vmatprep.subr.bf16.mxu0 0
      %1485 = vmatpush2.bf16.msra.mxu0 0
      %1486 = vmatprep.subr.bf16.mxu0 0
      %1487 = vmatpush2.bf16.msra.mxu0 0
      %1488 = vmatprep.subr.bf16.mxu0 0
      %1489 = vmatpush2.bf16.msra.mxu0 0
      %1490 = vmatprep.subr.bf16.mxu0 0
      %1491 = vmatpush2.bf16.msra.mxu0 0
      %1492 = vmatprep.subr.bf16.mxu0 0
      %1493 = vmatpush2.bf16.msra.mxu0 0
      %1494 = vmatprep.subr.bf16.mxu0 0
      %1495 = vmatpush2.bf16.msra.mxu0 0
      %1496 = vmatprep.mubr.bf16.mxu0 0
      %1497 = vmatmul.mubr.bf16.gmra.mxu0 %v1462
      %v1498 = vpop.f32.mrf.mxu0
      %v1499 = vadd.f32 0.0, %v1498
      %v1500 = vpop.f32.mrf.mxu0
      %v1501 = vpop.f32.mrf.mxu0
      %v1502 = vpop.f32.mrf.mxu0
      %1503 = vdwg.mxu0
      %v1504 = vadd.f32 %v1437, %v1499
      %v1505 = vld [vmem:[%s8] sm:$0x1]
      %v1507 = vlaneseq
      %v1508 = vshrl.u32 %v1507, 7
      %v1509 = vsub.s32 0, %v1508
      %v1510 = vrot.slane %v1505, %v1509
      %v1512 = vadd.f32 %v1504, %v1510
      %v1513 = vmax.f32 %v1512, 0.0
      %v1514 = vpack.c.bf16 %v1513, %v1513
      %v1515 = vld [vmem:[%s10] sm:$0xf]
      %v1516 = vld [vmem:[%s10 + $0x4] sm:$0xf]
      %v1517 = vld [vmem:[%s10 + $0x8] sm:$0xf]
      %v1518 = vld [vmem:[%s10 + $0xc] sm:$0xf]
      %v1523 = vunpack.c.l.b16 %v1515
      %v1524 = vunpack.c.l.b16 %v1516
      %v1525 = vunpack.c.l.b16 %v1517
      %v1526 = vunpack.c.l.b16 %v1518
      %v1527 = vpack.c.b16 %v1524, %v1523
      %v1528 = vpack.c.b16 %v1526, %v1525
      %v1532 = vsel %vm1343, %v1514, 0
      %1534 = vmatprep.subr.bf16.mxu0 0
      %1535 = vmatpush1.bf16.msra.mxu0 0
      %1536 = vmatprep.subr.bf16.mxu0 0
      %1537 = vmatpush1.bf16.msra.mxu0 0
      %1538 = vmatprep.subr.bf16.mxu0 0
      %1539 = vmatpush1.bf16.msra.mxu0 0
      %1540 = vmatprep.subr.bf16.mxu0 0
      %1541 = vmatpush1.bf16.msra.mxu0 0
      %1542 = vmatprep.subr.bf16.mxu0 0
      %1543 = vmatpush1.bf16.msra.mxu0 0
      %1544 = vmatprep.subr.bf16.mxu0 0
      %1545 = vmatpush1.bf16.msra.mxu0 0
      %1546 = vmatprep.subr.bf16.mxu0 0
      %1547 = vmatpush1.bf16.msra.mxu0 %v1528
      %1548 = vmatprep.subr.bf16.mxu0 0
      %1549 = vmatpush1.bf16.msra.mxu0 %v1527
      %1550 = vmatprep.subr.bf16.mxu0 0
      %1551 = vmatpush2.bf16.msra.mxu0 0
      %1552 = vmatprep.subr.bf16.mxu0 0
      %1553 = vmatpush2.bf16.msra.mxu0 0
      %1554 = vmatprep.subr.bf16.mxu0 0
      %1555 = vmatpush2.bf16.msra.mxu0 0
      %1556 = vmatprep.subr.bf16.mxu0 0
      %1557 = vmatpush2.bf16.msra.mxu0 0
      %1558 = vmatprep.subr.bf16.mxu0 0
      %1559 = vmatpush2.bf16.msra.mxu0 0
      %1560 = vmatprep.subr.bf16.mxu0 0
      %1561 = vmatpush2.bf16.msra.mxu0 0
      %1562 = vmatprep.subr.bf16.mxu0 0
      %1563 = vmatpush2.bf16.msra.mxu0 0
      %1564 = vmatprep.subr.bf16.mxu0 0
      %1565 = vmatpush2.bf16.msra.mxu0 0
      %1566 = vmatprep.mubr.bf16.mxu0 0
      %1567 = vmatmul.mubr.bf16.gmra.mxu0 %v1532
      %v1568 = vpop.f32.mrf.mxu0
      %v1569 = vadd.f32 0.0, %v1568
      %v1570 = vpop.f32.mrf.mxu0
      %v1571 = vpop.f32.mrf.mxu0
      %v1572 = vpop.f32.mrf.mxu0
      %1573 = vdwg.mxu0
      %v1574 = vld [vmem:[%s9] sm:$0xf]
      %v1575 = vpack.c.bf16 %v1569, %v1569
      %s1576 = scalar_lea.vmem %s10, 16
      %v1577 = vld [vmem:[%s1576] sm:$0xf]
      %v1578 = vld [vmem:[%s1576 + $0x4] sm:$0xf]
      %v1579 = vld [vmem:[%s1576 + $0x8] sm:$0xf]
      %v1580 = vld [vmem:[%s1576 + $0xc] sm:$0xf]
      %v1585 = vunpack.c.l.b16 %v1577
      %v1586 = vunpack.c.l.b16 %v1578
      %v1587 = vunpack.c.l.b16 %v1579
      %v1588 = vunpack.c.l.b16 %v1580
      %v1589 = vpack.c.b16 %v1586, %v1585
      %v1590 = vpack.c.b16 %v1588, %v1587
      %1593 = vmatprep.subr.bf16.mxu0 0
      %1594 = vmatpush1.bf16.msra.mxu0 0
      %1595 = vmatprep.subr.bf16.mxu0 0
      %1596 = vmatpush1.bf16.msra.mxu0 0
      %1597 = vmatprep.subr.bf16.mxu0 0
      %1598 = vmatpush1.bf16.msra.mxu0 0
      %1599 = vmatprep.subr.bf16.mxu0 0
      %1600 = vmatpush1.bf16.msra.mxu0 0
      %1601 = vmatprep.subr.bf16.mxu0 0
      %1602 = vmatpush1.bf16.msra.mxu0 0
      %1603 = vmatprep.subr.bf16.mxu0 0
      %1604 = vmatpush1.bf16.msra.mxu0 0
      %1605 = vmatprep.subr.bf16.mxu0 0
      %1606 = vmatpush1.bf16.msra.mxu0 %v1590
      %1607 = vmatprep.subr.bf16.mxu0 0
      %1608 = vmatpush1.bf16.msra.mxu0 %v1589
      %1609 = vmatprep.subr.bf16.mxu0 0
      %1610 = vmatpush2.bf16.msra.mxu0 0
      %1611 = vmatprep.subr.bf16.mxu0 0
      %1612 = vmatpush2.bf16.msra.mxu0 0
      %1613 = vmatprep.subr.bf16.mxu0 0
      %1614 = vmatpush2.bf16.msra.mxu0 0
      %1615 = vmatprep.subr.bf16.mxu0 0
      %1616 = vmatpush2.bf16.msra.mxu0 0
      %1617 = vmatprep.subr.bf16.mxu0 0
      %1618 = vmatpush2.bf16.msra.mxu0 0
      %1619 = vmatprep.subr.bf16.mxu0 0
      %1620 = vmatpush2.bf16.msra.mxu0 0
      %1621 = vmatprep.subr.bf16.mxu0 0
      %1622 = vmatpush2.bf16.msra.mxu0 0
      %1623 = vmatprep.subr.bf16.mxu0 0
      %1624 = vmatpush2.bf16.msra.mxu0 0
      %1625 = vmatprep.mubr.bf16.mxu0 0
      %1626 = vmatmul.mubr.bf16.gmra.mxu0 %v1532
      %v1627 = vpop.f32.mrf.mxu0
      %v1628 = vadd.f32 0.0, %v1627
      %v1629 = vpop.f32.mrf.mxu0
      %v1630 = vpop.f32.mrf.mxu0
      %v1631 = vpop.f32.mrf.mxu0
      %1632 = vdwg.mxu0
      %s1633 = scalar_lea.vmem %s9, 4
      %v1634 = vld [vmem:[%s1633] sm:$0xf]
      %v1635 = vpack.c.bf16 %v1628, %v1628
      %vm1636 = vcmask 31744
      %v1638 = vsel %vm1636, %v1634, 0
      %vm1640 = vcmask 1041408
      %v1642 = vsel %vm1640, %v1635, 0
      %1644 = vmatprep.subr.bf16.mxu0 0
      %1645 = vmatpush1.bf16.msra.mxu0 0
      %1646 = vmatprep.subr.bf16.mxu0 0
      %1647 = vmatpush1.bf16.msra.mxu0 0
      %1648 = vmatprep.subr.bf16.mxu0 0
      %1649 = vmatpush1.bf16.msra.mxu0 0
      %1650 = vmatprep.subr.bf16.mxu0 0
      %1651 = vmatpush1.bf16.msra.mxu0 0
      %1652 = vmatprep.subr.bf16.mxu0 0
      %1653 = vmatpush1.bf16.msra.mxu0 0
      %1654 = vmatprep.subr.bf16.mxu0 0
      %1655 = vmatpush1.bf16.msra.mxu0 0
      %1656 = vmatprep.subr.bf16.mxu0 0
      %1657 = vmatpush1.bf16.msra.mxu0 0
      %1658 = vmatprep.subr.bf16.mxu0 0
      %1659 = vmatpush1.bf16.msra.mxu0 %v1642
      %1660 = vmatprep.subr.bf16.mxu0 0
      %1661 = vmatpush2.bf16.msra.mxu0 0
      %1662 = vmatprep.subr.bf16.mxu0 0
      %1663 = vmatpush2.bf16.msra.mxu0 0
      %1664 = vmatprep.subr.bf16.mxu0 0
      %1665 = vmatpush2.bf16.msra.mxu0 0
      %1666 = vmatprep.subr.bf16.mxu0 0
      %1667 = vmatpush2.bf16.msra.mxu0 0
      %1668 = vmatprep.subr.bf16.mxu0 0
      %1669 = vmatpush2.bf16.msra.mxu0 0
      %1670 = vmatprep.subr.bf16.mxu0 0
      %1671 = vmatpush2.bf16.msra.mxu0 0
      %1672 = vmatprep.subr.bf16.mxu0 0
      %1673 = vmatpush2.bf16.msra.mxu0 0
      %1674 = vmatprep.subr.bf16.mxu0 0
      %1675 = vmatpush2.bf16.msra.mxu0 0
      %1676 = vmatprep.mubr.bf16.mxu0 0
      %1677 = vmatmul.mubr.bf16.gmra.mxu0 %v1638
      %v1678 = vpop.f32.mrf.mxu0
      %v1679 = vadd.f32 0.0, %v1678
      %v1680 = vpop.f32.mrf.mxu0
      %v1681 = vpop.f32.mrf.mxu0
      %v1682 = vpop.f32.mrf.mxu0
      %1683 = vdwg.mxu0
      %v1685 = vsel %vm1636, %v1574, 0
      %v1688 = vsel %vm1640, %v1575, 0
      %1690 = vmatprep.subr.bf16.mxu0 0
      %1691 = vmatpush1.bf16.msra.mxu0 0
      %1692 = vmatprep.subr.bf16.mxu0 0
      %1693 = vmatpush1.bf16.msra.mxu0 0
      %1694 = vmatprep.subr.bf16.mxu0 0
      %1695 = vmatpush1.bf16.msra.mxu0 0
      %1696 = vmatprep.subr.bf16.mxu0 0
      %1697 = vmatpush1.bf16.msra.mxu0 0
      %1698 = vmatprep.subr.bf16.mxu0 0
      %1699 = vmatpush1.bf16.msra.mxu0 0
      %1700 = vmatprep.subr.bf16.mxu0 0
      %1701 = vmatpush1.bf16.msra.mxu0 0
      %1702 = vmatprep.subr.bf16.mxu0 0
      %1703 = vmatpush1.bf16.msra.mxu0 0
      %1704 = vmatprep.subr.bf16.mxu0 0
      %1705 = vmatpush1.bf16.msra.mxu0 %v1688
      %1706 = vmatprep.subr.bf16.mxu0 0
      %1707 = vmatpush2.bf16.msra.mxu0 0
      %1708 = vmatprep.subr.bf16.mxu0 0
      %1709 = vmatpush2.bf16.msra.mxu0 0
      %1710 = vmatprep.subr.bf16.mxu0 0
      %1711 = vmatpush2.bf16.msra.mxu0 0
      %1712 = vmatprep.subr.bf16.mxu0 0
      %1713 = vmatpush2.bf16.msra.mxu0 0
      %1714 = vmatprep.subr.bf16.mxu0 0
      %1715 = vmatpush2.bf16.msra.mxu0 0
      %1716 = vmatprep.subr.bf16.mxu0 0
      %1717 = vmatpush2.bf16.msra.mxu0 0
      %1718 = vmatprep.subr.bf16.mxu0 0
      %1719 = vmatpush2.bf16.msra.mxu0 0
      %1720 = vmatprep.subr.bf16.mxu0 0
      %1721 = vmatpush2.bf16.msra.mxu0 0
      %1722 = vmatprep.mubr.bf16.mxu0 0
      %1723 = vmatmul.mubr.bf16.gmra.mxu0 %v1685
      %v1724 = vpop.f32.mrf.mxu0
      %v1725 = vadd.f32 %v1679, %v1724
      %v1726 = vpop.f32.mrf.mxu0
      %v1727 = vpop.f32.mrf.mxu0
      %v1728 = vpop.f32.mrf.mxu0
      %1729 = vdwg.mxu0
      %s1730 = scalar_lea.vmem %s10, 32
      %v1731 = vld [vmem:[%s1730] sm:$0xf]
      %v1732 = vld [vmem:[%s1730 + $0x4] sm:$0xf]
      %v1733 = vld [vmem:[%s1730 + $0x8] sm:$0xf]
      %v1734 = vld [vmem:[%s1730 + $0xc] sm:$0xf]
      %v1739 = vunpack.c.l.b16 %v1731
      %v1740 = vunpack.c.l.b16 %v1732
      %v1741 = vunpack.c.l.b16 %v1733
      %v1742 = vunpack.c.l.b16 %v1734
      %v1743 = vpack.c.b16 %v1740, %v1739
      %v1744 = vpack.c.b16 %v1742, %v1741
      %1747 = vmatprep.subr.bf16.mxu0 0
      %1748 = vmatpush1.bf16.msra.mxu0 0
      %1749 = vmatprep.subr.bf16.mxu0 0
      %1750 = vmatpush1.bf16.msra.mxu0 0
      %1751 = vmatprep.subr.bf16.mxu0 0
      %1752 = vmatpush1.bf16.msra.mxu0 0
      %1753 = vmatprep.subr.bf16.mxu0 0
      %1754 = vmatpush1.bf16.msra.mxu0 0
      %1755 = vmatprep.subr.bf16.mxu0 0
      %1756 = vmatpush1.bf16.msra.mxu0 0
      %1757 = vmatprep.subr.bf16.mxu0 0
      %1758 = vmatpush1.bf16.msra.mxu0 0
      %1759 = vmatprep.subr.bf16.mxu0 0
      %1760 = vmatpush1.bf16.msra.mxu0 %v1744
      %1761 = vmatprep.subr.bf16.mxu0 0
      %1762 = vmatpush1.bf16.msra.mxu0 %v1743
      %1763 = vmatprep.subr.bf16.mxu0 0
      %1764 = vmatpush2.bf16.msra.mxu0 0
      %1765 = vmatprep.subr.bf16.mxu0 0
      %1766 = vmatpush2.bf16.msra.mxu0 0
      %1767 = vmatprep.subr.bf16.mxu0 0
      %1768 = vmatpush2.bf16.msra.mxu0 0
      %1769 = vmatprep.subr.bf16.mxu0 0
      %1770 = vmatpush2.bf16.msra.mxu0 0
      %1771 = vmatprep.subr.bf16.mxu0 0
      %1772 = vmatpush2.bf16.msra.mxu0 0
      %1773 = vmatprep.subr.bf16.mxu0 0
      %1774 = vmatpush2.bf16.msra.mxu0 0
      %1775 = vmatprep.subr.bf16.mxu0 0
      %1776 = vmatpush2.bf16.msra.mxu0 0
      %1777 = vmatprep.subr.bf16.mxu0 0
      %1778 = vmatpush2.bf16.msra.mxu0 0
      %1779 = vmatprep.mubr.bf16.mxu0 0
      %1780 = vmatmul.mubr.bf16.gmra.mxu0 %v1532
      %v1781 = vpop.f32.mrf.mxu0
      %v1782 = vadd.f32 0.0, %v1781
      %v1783 = vpop.f32.mrf.mxu0
      %v1784 = vpop.f32.mrf.mxu0
      %v1785 = vpop.f32.mrf.mxu0
      %1786 = vdwg.mxu0
      %s1787 = scalar_lea.vmem %s9, 8
      %v1788 = vld [vmem:[%s1787] sm:$0xf]
      %v1789 = vpack.c.bf16 %v1782, %v1782
      %v1791 = vsel %vm1636, %v1788, 0
      %v1794 = vsel %vm1640, %v1789, 0
      %1796 = vmatprep.subr.bf16.mxu0 0
      %1797 = vmatpush1.bf16.msra.mxu0 0
      %1798 = vmatprep.subr.bf16.mxu0 0
      %1799 = vmatpush1.bf16.msra.mxu0 0
      %1800 = vmatprep.subr.bf16.mxu0 0
      %1801 = vmatpush1.bf16.msra.mxu0 0
      %1802 = vmatprep.subr.bf16.mxu0 0
      %1803 = vmatpush1.bf16.msra.mxu0 0
      %1804 = vmatprep.subr.bf16.mxu0 0
      %1805 = vmatpush1.bf16.msra.mxu0 0
      %1806 = vmatprep.subr.bf16.mxu0 0
      %1807 = vmatpush1.bf16.msra.mxu0 0
      %1808 = vmatprep.subr.bf16.mxu0 0
      %1809 = vmatpush1.bf16.msra.mxu0 0
      %1810 = vmatprep.subr.bf16.mxu0 0
      %1811 = vmatpush1.bf16.msra.mxu0 %v1794
      %1812 = vmatprep.subr.bf16.mxu0 0
      %1813 = vmatpush2.bf16.msra.mxu0 0
      %1814 = vmatprep.subr.bf16.mxu0 0
      %1815 = vmatpush2.bf16.msra.mxu0 0
      %1816 = vmatprep.subr.bf16.mxu0 0
      %1817 = vmatpush2.bf16.msra.mxu0 0
      %1818 = vmatprep.subr.bf16.mxu0 0
      %1819 = vmatpush2.bf16.msra.mxu0 0
      %1820 = vmatprep.subr.bf16.mxu0 0
      %1821 = vmatpush2.bf16.msra.mxu0 0
      %1822 = vmatprep.subr.bf16.mxu0 0
      %1823 = vmatpush2.bf16.msra.mxu0 0
      %1824 = vmatprep.subr.bf16.mxu0 0
      %1825 = vmatpush2.bf16.msra.mxu0 0
      %1826 = vmatprep.subr.bf16.mxu0 0
      %1827 = vmatpush2.bf16.msra.mxu0 0
      %1828 = vmatprep.mubr.bf16.mxu0 0
      %1829 = vmatmul.mubr.bf16.gmra.mxu0 %v1791
      %v1830 = vpop.f32.mrf.mxu0
      %v1831 = vadd.f32 0.0, %v1830
      %v1832 = vpop.f32.mrf.mxu0
      %v1833 = vpop.f32.mrf.mxu0
      %v1834 = vpop.f32.mrf.mxu0
      %1835 = vdwg.mxu0
      %v1836 = vadd.f32 %v1725, %v1831
      %v1837 = vld [vmem:[%s11] sm:$0x1]
      %v1839 = vlaneseq
      %v1840 = vshrl.u32 %v1839, 7
      %v1841 = vsub.s32 0, %v1840
      %v1842 = vrot.slane %v1837, %v1841
      %v1844 = vadd.f32 %v1836, %v1842
      %v1845 = vadd.f32 %v1844, %v1063
      %v1846 = vmax.f32 %v1845, 0.0
      %1847 = vst.msk [vmem:[%s569] sm:$0xff] %vm617, %v1846
      %v1848 = vpack.c.bf16 %v1846, %v1846
      %v1849 = vld [vmem:[%s13] sm:$0xf]
      %v1850 = vld [vmem:[%s13 + $0x4] sm:$0xf]
      %v1851 = vld [vmem:[%s13 + $0x8] sm:$0xf]
      %v1852 = vld [vmem:[%s13 + $0xc] sm:$0xf]
      %v1853 = vld [vmem:[%s13 + $0x10] sm:$0xf]
      %v1854 = vld [vmem:[%s13 + $0x14] sm:$0xf]
      %v1855 = vld [vmem:[%s13 + $0x18] sm:$0xf]
      %v1856 = vld [vmem:[%s13 + $0x1c] sm:$0xf]
      %v1865 = vunpack.c.l.b16 %v1849
      %v1866 = vunpack.c.l.b16 %v1850
      %v1867 = vunpack.c.l.b16 %v1851
      %v1868 = vunpack.c.l.b16 %v1852
      %v1869 = vunpack.c.l.b16 %v1853
      %v1870 = vunpack.c.l.b16 %v1854
      %v1871 = vunpack.c.l.b16 %v1855
      %v1872 = vunpack.c.l.b16 %v1856
      %v1873 = vpack.c.b16 %v1866, %v1865
      %v1874 = vpack.c.b16 %v1868, %v1867
      %v1875 = vpack.c.b16 %v1870, %v1869
      %v1876 = vpack.c.b16 %v1872, %v1871
      %v1882 = vsel %vm617, %v1848, 0
      %1884 = vmatprep.subr.bf16.mxu0 0
      %1885 = vmatpush1.bf16.msra.mxu0 0
      %1886 = vmatprep.subr.bf16.mxu0 0
      %1887 = vmatpush1.bf16.msra.mxu0 0
      %1888 = vmatprep.subr.bf16.mxu0 0
      %1889 = vmatpush1.bf16.msra.mxu0 0
      %1890 = vmatprep.subr.bf16.mxu0 0
      %1891 = vmatpush1.bf16.msra.mxu0 0
      %1892 = vmatprep.subr.bf16.mxu0 0
      %1893 = vmatpush1.bf16.msra.mxu0 %v1876
      %1894 = vmatprep.subr.bf16.mxu0 0
      %1895 = vmatpush1.bf16.msra.mxu0 %v1875
      %1896 = vmatprep.subr.bf16.mxu0 0
      %1897 = vmatpush1.bf16.msra.mxu0 %v1874
      %1898 = vmatprep.subr.bf16.mxu0 0
      %1899 = vmatpush1.bf16.msra.mxu0 %v1873
      %1900 = vmatprep.subr.bf16.mxu0 0
      %1901 = vmatpush2.bf16.msra.mxu0 0
      %1902 = vmatprep.subr.bf16.mxu0 0
      %1903 = vmatpush2.bf16.msra.mxu0 0
      %1904 = vmatprep.subr.bf16.mxu0 0
      %1905 = vmatpush2.bf16.msra.mxu0 0
      %1906 = vmatprep.subr.bf16.mxu0 0
      %1907 = vmatpush2.bf16.msra.mxu0 0
      %1908 = vmatprep.subr.bf16.mxu0 0
      %1909 = vmatpush2.bf16.msra.mxu0 0
      %1910 = vmatprep.subr.bf16.mxu0 0
      %1911 = vmatpush2.bf16.msra.mxu0 0
      %1912 = vmatprep.subr.bf16.mxu0 0
      %1913 = vmatpush2.bf16.msra.mxu0 0
      %1914 = vmatprep.subr.bf16.mxu0 0
      %1915 = vmatpush2.bf16.msra.mxu0 0
      %1916 = vmatprep.mubr.bf16.mxu0 0
      %1917 = vmatmul.mubr.bf16.gmra.mxu0 %v1882
      %v1918 = vpop.f32.mrf.mxu0
      %v1919 = vadd.f32 0.0, %v1918
      %v1920 = vpop.f32.mrf.mxu0
      %v1921 = vpop.f32.mrf.mxu0
      %v1922 = vpop.f32.mrf.mxu0
      %1923 = vdwg.mxu0
      %v1924 = vld [vmem:[%s12] sm:$0xf]
      %v1925 = vld [vmem:[%s12 + $0x4] sm:$0xf]
      %v1926 = vpack.c.bf16 %v1919, %v1919
      %s1927 = scalar_lea.vmem %s13, 32
      %v1928 = vld [vmem:[%s1927] sm:$0xf]
      %v1929 = vld [vmem:[%s1927 + $0x4] sm:$0xf]
      %v1930 = vld [vmem:[%s1927 + $0x8] sm:$0xf]
      %v1931 = vld [vmem:[%s1927 + $0xc] sm:$0xf]
      %v1932 = vld [vmem:[%s1927 + $0x10] sm:$0xf]
      %v1933 = vld [vmem:[%s1927 + $0x14] sm:$0xf]
      %v1934 = vld [vmem:[%s1927 + $0x18] sm:$0xf]
      %v1935 = vld [vmem:[%s1927 + $0x1c] sm:$0xf]
      %v1944 = vunpack.c.l.b16 %v1928
      %v1945 = vunpack.c.l.b16 %v1929
      %v1946 = vunpack.c.l.b16 %v1930
      %v1947 = vunpack.c.l.b16 %v1931
      %v1948 = vunpack.c.l.b16 %v1932
      %v1949 = vunpack.c.l.b16 %v1933
      %v1950 = vunpack.c.l.b16 %v1934
      %v1951 = vunpack.c.l.b16 %v1935
      %v1952 = vpack.c.b16 %v1945, %v1944
      %v1953 = vpack.c.b16 %v1947, %v1946
      %v1954 = vpack.c.b16 %v1949, %v1948
      %v1955 = vpack.c.b16 %v1951, %v1950
      %1960 = vmatprep.subr.bf16.mxu0 0
      %1961 = vmatpush1.bf16.msra.mxu0 0
      %1962 = vmatprep.subr.bf16.mxu0 0
      %1963 = vmatpush1.bf16.msra.mxu0 0
      %1964 = vmatprep.subr.bf16.mxu0 0
      %1965 = vmatpush1.bf16.msra.mxu0 0
      %1966 = vmatprep.subr.bf16.mxu0 0
      %1967 = vmatpush1.bf16.msra.mxu0 0
      %1968 = vmatprep.subr.bf16.mxu0 0
      %1969 = vmatpush1.bf16.msra.mxu0 %v1955
      %1970 = vmatprep.subr.bf16.mxu0 0
      %1971 = vmatpush1.bf16.msra.mxu0 %v1954
      %1972 = vmatprep.subr.bf16.mxu0 0
      %1973 = vmatpush1.bf16.msra.mxu0 %v1953
      %1974 = vmatprep.subr.bf16.mxu0 0
      %1975 = vmatpush1.bf16.msra.mxu0 %v1952
      %1976 = vmatprep.subr.bf16.mxu0 0
      %1977 = vmatpush2.bf16.msra.mxu0 0
      %1978 = vmatprep.subr.bf16.mxu0 0
      %1979 = vmatpush2.bf16.msra.mxu0 0
      %1980 = vmatprep.subr.bf16.mxu0 0
      %1981 = vmatpush2.bf16.msra.mxu0 0
      %1982 = vmatprep.subr.bf16.mxu0 0
      %1983 = vmatpush2.bf16.msra.mxu0 0
      %1984 = vmatprep.subr.bf16.mxu0 0
      %1985 = vmatpush2.bf16.msra.mxu0 0
      %1986 = vmatprep.subr.bf16.mxu0 0
      %1987 = vmatpush2.bf16.msra.mxu0 0
      %1988 = vmatprep.subr.bf16.mxu0 0
      %1989 = vmatpush2.bf16.msra.mxu0 0
      %1990 = vmatprep.subr.bf16.mxu0 0
      %1991 = vmatpush2.bf16.msra.mxu0 0
      %1992 = vmatprep.mubr.bf16.mxu0 0
      %1993 = vmatmul.mubr.bf16.gmra.mxu0 %v1882
      %v1994 = vpop.f32.mrf.mxu0
      %v1995 = vadd.f32 0.0, %v1994
      %v1996 = vpop.f32.mrf.mxu0
      %v1997 = vpop.f32.mrf.mxu0
      %v1998 = vpop.f32.mrf.mxu0
      %1999 = vdwg.mxu0
      %s2000 = scalar_lea.vmem %s12, 8
      %v2001 = vld [vmem:[%s2000] sm:$0xf]
      %v2002 = vld [vmem:[%s2000 + $0x4] sm:$0xf]
      %v2003 = vpack.c.bf16 %v1995, %v1995
      %v2006 = vunpack.c.l.b16 %v2001
      %v2007 = vunpack.c.l.b16 %v2002
      %v2008 = vpack.c.b16 %v2007, %v2006
      %vm2009 = vcmask 64512
      %v2011 = vsel %vm2009, %v2008, 0
      %vm2013 = vcmask 1043456
      %v2015 = vsel %vm2013, %v2003, 0
      %2017 = vmatprep.subr.bf16.mxu0 0
      %2018 = vmatpush1.bf16.msra.mxu0 0
      %2019 = vmatprep.subr.bf16.mxu0 0
      %2020 = vmatpush1.bf16.msra.mxu0 0
      %2021 = vmatprep.subr.bf16.mxu0 0
      %2022 = vmatpush1.bf16.msra.mxu0 0
      %2023 = vmatprep.subr.bf16.mxu0 0
      %2024 = vmatpush1.bf16.msra.mxu0 0
      %2025 = vmatprep.subr.bf16.mxu0 0
      %2026 = vmatpush1.bf16.msra.mxu0 0
      %2027 = vmatprep.subr.bf16.mxu0 0
      %2028 = vmatpush1.bf16.msra.mxu0 0
      %2029 = vmatprep.subr.bf16.mxu0 0
      %2030 = vmatpush1.bf16.msra.mxu0 0
      %2031 = vmatprep.subr.bf16.mxu0 0
      %2032 = vmatpush1.bf16.msra.mxu0 %v2015
      %2033 = vmatprep.subr.bf16.mxu0 0
      %2034 = vmatpush2.bf16.msra.mxu0 0
      %2035 = vmatprep.subr.bf16.mxu0 0
      %2036 = vmatpush2.bf16.msra.mxu0 0
      %2037 = vmatprep.subr.bf16.mxu0 0
      %2038 = vmatpush2.bf16.msra.mxu0 0
      %2039 = vmatprep.subr.bf16.mxu0 0
      %2040 = vmatpush2.bf16.msra.mxu0 0
      %2041 = vmatprep.subr.bf16.mxu0 0
      %2042 = vmatpush2.bf16.msra.mxu0 0
      %2043 = vmatprep.subr.bf16.mxu0 0
      %2044 = vmatpush2.bf16.msra.mxu0 0
      %2045 = vmatprep.subr.bf16.mxu0 0
      %2046 = vmatpush2.bf16.msra.mxu0 0
      %2047 = vmatprep.subr.bf16.mxu0 0
      %2048 = vmatpush2.bf16.msra.mxu0 0
      %2049 = vmatprep.mubr.bf16.mxu0 0
      %2050 = vmatmul.mubr.bf16.gmra.mxu0 %v2011
      %v2051 = vpop.f32.mrf.mxu0
      %v2052 = vadd.f32 0.0, %v2051
      %v2053 = vpop.f32.mrf.mxu0
      %v2054 = vpop.f32.mrf.mxu0
      %v2055 = vadd.f32 0.0, %v2054
      %v2056 = vpop.f32.mrf.mxu0
      %2057 = vdwg.mxu0
      %v2060 = vunpack.c.l.b16 %v1924
      %v2061 = vunpack.c.l.b16 %v1925
      %v2062 = vpack.c.b16 %v2061, %v2060
      %v2064 = vsel %vm2009, %v2062, 0
      %v2067 = vsel %vm2013, %v1926, 0
      %2069 = vmatprep.subr.bf16.mxu0 0
      %2070 = vmatpush1.bf16.msra.mxu0 0
      %2071 = vmatprep.subr.bf16.mxu0 0
      %2072 = vmatpush1.bf16.msra.mxu0 0
      %2073 = vmatprep.subr.bf16.mxu0 0
      %2074 = vmatpush1.bf16.msra.mxu0 0
      %2075 = vmatprep.subr.bf16.mxu0 0
      %2076 = vmatpush1.bf16.msra.mxu0 0
      %2077 = vmatprep.subr.bf16.mxu0 0
      %2078 = vmatpush1.bf16.msra.mxu0 0
      %2079 = vmatprep.subr.bf16.mxu0 0
      %2080 = vmatpush1.bf16.msra.mxu0 0
      %2081 = vmatprep.subr.bf16.mxu0 0
      %2082 = vmatpush1.bf16.msra.mxu0 0
      %2083 = vmatprep.subr.bf16.mxu0 0
      %2084 = vmatpush1.bf16.msra.mxu0 %v2067
      %2085 = vmatprep.subr.bf16.mxu0 0
      %2086 = vmatpush2.bf16.msra.mxu0 0
      %2087 = vmatprep.subr.bf16.mxu0 0
      %2088 = vmatpush2.bf16.msra.mxu0 0
      %2089 = vmatprep.subr.bf16.mxu0 0
      %2090 = vmatpush2.bf16.msra.mxu0 0
      %2091 = vmatprep.subr.bf16.mxu0 0
      %2092 = vmatpush2.bf16.msra.mxu0 0
      %2093 = vmatprep.subr.bf16.mxu0 0
      %2094 = vmatpush2.bf16.msra.mxu0 0
      %2095 = vmatprep.subr.bf16.mxu0 0
      %2096 = vmatpush2.bf16.msra.mxu0 0
      %2097 = vmatprep.subr.bf16.mxu0 0
      %2098 = vmatpush2.bf16.msra.mxu0 0
      %2099 = vmatprep.subr.bf16.mxu0 0
      %2100 = vmatpush2.bf16.msra.mxu0 0
      %2101 = vmatprep.mubr.bf16.mxu0 0
      %2102 = vmatmul.mubr.bf16.gmra.mxu0 %v2064
      %v2103 = vpop.f32.mrf.mxu0
      %v2104 = vadd.f32 %v2052, %v2103
      %v2105 = vpop.f32.mrf.mxu0
      %v2106 = vpop.f32.mrf.mxu0
      %v2107 = vadd.f32 %v2055, %v2106
      %v2108 = vpop.f32.mrf.mxu0
      %2109 = vdwg.mxu0
      %s2110 = scalar_lea.vmem %s13, 64
      %v2111 = vld [vmem:[%s2110] sm:$0xf]
      %v2112 = vld [vmem:[%s2110 + $0x4] sm:$0xf]
      %v2113 = vld [vmem:[%s2110 + $0x8] sm:$0xf]
      %v2114 = vld [vmem:[%s2110 + $0xc] sm:$0xf]
      %v2115 = vld [vmem:[%s2110 + $0x10] sm:$0xf]
      %v2116 = vld [vmem:[%s2110 + $0x14] sm:$0xf]
      %v2117 = vld [vmem:[%s2110 + $0x18] sm:$0xf]
      %v2118 = vld [vmem:[%s2110 + $0x1c] sm:$0xf]
      %v2127 = vunpack.c.l.b16 %v2111
      %v2128 = vunpack.c.l.b16 %v2112
      %v2129 = vunpack.c.l.b16 %v2113
      %v2130 = vunpack.c.l.b16 %v2114
      %v2131 = vunpack.c.l.b16 %v2115
      %v2132 = vunpack.c.l.b16 %v2116
      %v2133 = vunpack.c.l.b16 %v2117
      %v2134 = vunpack.c.l.b16 %v2118
      %v2135 = vpack.c.b16 %v2128, %v2127
      %v2136 = vpack.c.b16 %v2130, %v2129
      %v2137 = vpack.c.b16 %v2132, %v2131
      %v2138 = vpack.c.b16 %v2134, %v2133
      %2143 = vmatprep.subr.bf16.mxu0 0
      %2144 = vmatpush1.bf16.msra.mxu0 0
      %2145 = vmatprep.subr.bf16.mxu0 0
      %2146 = vmatpush1.bf16.msra.mxu0 0
      %2147 = vmatprep.subr.bf16.mxu0 0
      %2148 = vmatpush1.bf16.msra.mxu0 0
      %2149 = vmatprep.subr.bf16.mxu0 0
      %2150 = vmatpush1.bf16.msra.mxu0 0
      %2151 = vmatprep.subr.bf16.mxu0 0
      %2152 = vmatpush1.bf16.msra.mxu0 %v2138
      %2153 = vmatprep.subr.bf16.mxu0 0
      %2154 = vmatpush1.bf16.msra.mxu0 %v2137
      %2155 = vmatprep.subr.bf16.mxu0 0
      %2156 = vmatpush1.bf16.msra.mxu0 %v2136
      %2157 = vmatprep.subr.bf16.mxu0 0
      %2158 = vmatpush1.bf16.msra.mxu0 %v2135
      %2159 = vmatprep.subr.bf16.mxu0 0
      %2160 = vmatpush2.bf16.msra.mxu0 0
      %2161 = vmatprep.subr.bf16.mxu0 0
      %2162 = vmatpush2.bf16.msra.mxu0 0
      %2163 = vmatprep.subr.bf16.mxu0 0
      %2164 = vmatpush2.bf16.msra.mxu0 0
      %2165 = vmatprep.subr.bf16.mxu0 0
      %2166 = vmatpush2.bf16.msra.mxu0 0
      %2167 = vmatprep.subr.bf16.mxu0 0
      %2168 = vmatpush2.bf16.msra.mxu0 0
      %2169 = vmatprep.subr.bf16.mxu0 0
      %2170 = vmatpush2.bf16.msra.mxu0 0
      %2171 = vmatprep.subr.bf16.mxu0 0
      %2172 = vmatpush2.bf16.msra.mxu0 0
      %2173 = vmatprep.subr.bf16.mxu0 0
      %2174 = vmatpush2.bf16.msra.mxu0 0
      %2175 = vmatprep.mubr.bf16.mxu0 0
      %2176 = vmatmul.mubr.bf16.gmra.mxu0 %v1882
      %v2177 = vpop.f32.mrf.mxu0
      %v2178 = vadd.f32 0.0, %v2177
      %v2179 = vpop.f32.mrf.mxu0
      %v2180 = vpop.f32.mrf.mxu0
      %v2181 = vpop.f32.mrf.mxu0
      %2182 = vdwg.mxu0
      %s2183 = scalar_lea.vmem %s12, 16
      %v2184 = vld [vmem:[%s2183] sm:$0xf]
      %v2185 = vld [vmem:[%s2183 + $0x4] sm:$0xf]
      %v2186 = vpack.c.bf16 %v2178, %v2178
      %v2189 = vunpack.c.l.b16 %v2184
      %v2190 = vunpack.c.l.b16 %v2185
      %v2191 = vpack.c.b16 %v2190, %v2189
      %v2193 = vsel %vm2009, %v2191, 0
      %v2196 = vsel %vm2013, %v2186, 0
      %2198 = vmatprep.subr.bf16.mxu0 0
      %2199 = vmatpush1.bf16.msra.mxu0 0
      %2200 = vmatprep.subr.bf16.mxu0 0
      %2201 = vmatpush1.bf16.msra.mxu0 0
      %2202 = vmatprep.subr.bf16.mxu0 0
      %2203 = vmatpush1.bf16.msra.mxu0 0
      %2204 = vmatprep.subr.bf16.mxu0 0
      %2205 = vmatpush1.bf16.msra.mxu0 0
      %2206 = vmatprep.subr.bf16.mxu0 0
      %2207 = vmatpush1.bf16.msra.mxu0 0
      %2208 = vmatprep.subr.bf16.mxu0 0
      %2209 = vmatpush1.bf16.msra.mxu0 0
      %2210 = vmatprep.subr.bf16.mxu0 0
      %2211 = vmatpush1.bf16.msra.mxu0 0
      %2212 = vmatprep.subr.bf16.mxu0 0
      %2213 = vmatpush1.bf16.msra.mxu0 %v2196
      %2214 = vmatprep.subr.bf16.mxu0 0
      %2215 = vmatpush2.bf16.msra.mxu0 0
      %2216 = vmatprep.subr.bf16.mxu0 0
      %2217 = vmatpush2.bf16.msra.mxu0 0
      %2218 = vmatprep.subr.bf16.mxu0 0
      %2219 = vmatpush2.bf16.msra.mxu0 0
      %2220 = vmatprep.subr.bf16.mxu0 0
      %2221 = vmatpush2.bf16.msra.mxu0 0
      %2222 = vmatprep.subr.bf16.mxu0 0
      %2223 = vmatpush2.bf16.msra.mxu0 0
      %2224 = vmatprep.subr.bf16.mxu0 0
      %2225 = vmatpush2.bf16.msra.mxu0 0
      %2226 = vmatprep.subr.bf16.mxu0 0
      %2227 = vmatpush2.bf16.msra.mxu0 0
      %2228 = vmatprep.subr.bf16.mxu0 0
      %2229 = vmatpush2.bf16.msra.mxu0 0
      %2230 = vmatprep.mubr.bf16.mxu0 0
      %2231 = vmatmul.mubr.bf16.gmra.mxu0 %v2193
      %v2232 = vpop.f32.mrf.mxu0
      %v2233 = vadd.f32 0.0, %v2232
      %v2234 = vpop.f32.mrf.mxu0
      %v2235 = vpop.f32.mrf.mxu0
      %v2236 = vadd.f32 0.0, %v2235
      %v2237 = vpop.f32.mrf.mxu0
      %2238 = vdwg.mxu0
      %v2239 = vadd.f32 %v2104, %v2233
      %v2240 = vadd.f32 %v2107, %v2236
      %v2241 = vld [vmem:[%s14] sm:$0x1]
      %v2243 = vlaneseq
      %v2244 = vshrl.u32 %v2243, 7
      %v2245 = vsub.s32 0, %v2244
      %v2246 = vrot.slane %v2241, %v2245
      %v2248 = vadd.f32 %v2239, %v2246
      %v2249 = vadd.f32 %v2240, %v2246
      %2250 = vst.msk [vmem:[%s561] sm:$0xff] %vm617, %v2248
      %2251 = vst.msk [vmem:[%s561 + $0x8] sm:$0xff] %vm617, %v2249
      %p2252 = scmp.lt.s32.totalorder %s29, 1
      %s2253 = scalar_select %p2252, %s29, 1
      %s2254 = smul.addr %s2253, 2
      %s2255 = smul.addr %s2254, 8
      %s2256 = scalar_lea.vmem %s15, %s2255
      %p2257 = scmp.lt.s32.totalorder %s29, 1
      %s2258 = scalar_select %p2257, %s29, 1
      %s2259 = smul.addr %s2258, 8
      %s2260 = scalar_lea.vmem %s16, %s2259
      %p2261 = scmp.lt.s32.totalorder %s29, 1
      %s2262 = scalar_select %p2261, %s29, 1
      %s2263 = smul.addr %s2262, 8
      %s2264 = scalar_lea.vmem %s17, %s2263
      // Predicated region
      $region81: #{hourglass2d_forward.1} parent=79 // pred_check
        %p2265 = pneg %p367
      $region82: #{hourglass2d_forward.1} parent=79 // pred_check_branch
        %2267 = sbr.rel (%p2265) target = $region84
      $region83: #{hourglass2d_forward.1} parent=79 // pred_region
        _
      $region84: #{hourglass2d_forward.1} parent=79 // pred_fallthru
        _
      // Predicated region
      $region85: #{hourglass2d_forward.1} parent=79 // pred_check
        %p2268 = pneg %p393
      $region86: #{hourglass2d_forward.1} parent=79 // pred_check_branch
        %2270 = sbr.rel (%p2268) target = $region88
      $region87: #{hourglass2d_forward.1} parent=79 // pred_region
        _
      $region88: #{hourglass2d_forward.1} parent=79 // pred_fallthru
        _
      // Predicated region
      $region89: #{hourglass2d_forward.1} parent=79 // pred_check
        %p2271 = pneg %p419
      $region90: #{hourglass2d_forward.1} parent=79 // pred_check_branch
        %2273 = sbr.rel (%p2271) target = $region92
      $region91: #{hourglass2d_forward.1} parent=79 // pred_region
        _
      $region92: #{hourglass2d_forward.1} parent=79 // pred_fallthru
        _
    $region80: #{hourglass2d_forward.1} parent=5 // pred_fallthru
      _
    %p2274 = scmp.le.s32.totalorder 2, %s24
    // Predicated region
    $region93: #{hourglass2d_forward.1} parent=5 // pred_check
      %p2275 = pneg %p2274
    $region94: #{hourglass2d_forward.1} parent=5 // pred_check_branch
      %2277 = sbr.rel (%p2275) target = $region96
    $region95: #{hourglass2d_forward.1} parent=5 // pred_region
      %s2278 = ssub.s32 %s24, 2
      // Predicated region
      $region97: #{hourglass2d_forward.1} parent=95 // pred_check
        %p2279 = pneg %p373
      $region98: #{hourglass2d_forward.1} parent=95 // pred_check_branch
        %2281 = sbr.rel (%p2279) target = $region100
      $region99: #{hourglass2d_forward.1} parent=95 // pred_region
        %p2282 = scmp.lt.s32.totalorder %s30, 1
        %s2283 = scalar_select %p2282, %s30, 1
        %s2284 = smul.addr %s2283, 2
        %s2285 = smul.addr %s2284, 8
        %s2286 = scalar_lea.vmem %s15, %s2285
      $region100: #{hourglass2d_forward.1} parent=95 // pred_fallthru
        _
      // Predicated region
      $region101: #{hourglass2d_forward.1} parent=95 // pred_check
        %p2287 = pneg %p399
      $region102: #{hourglass2d_forward.1} parent=95 // pred_check_branch
        %2289 = sbr.rel (%p2287) target = $region104
      $region103: #{hourglass2d_forward.1} parent=95 // pred_region
        %p2290 = scmp.lt.s32.totalorder %s30, 1
        %s2291 = scalar_select %p2290, %s30, 1
        %s2292 = smul.addr %s2291, 8
        %s2293 = scalar_lea.vmem %s16, %s2292
      $region104: #{hourglass2d_forward.1} parent=95 // pred_fallthru
        _
      // Predicated region
      $region105: #{hourglass2d_forward.1} parent=95 // pred_check
        %p2294 = pneg %p425
      $region106: #{hourglass2d_forward.1} parent=95 // pred_check_branch
        %2296 = sbr.rel (%p2294) target = $region108
      $region107: #{hourglass2d_forward.1} parent=95 // pred_region
        %p2297 = scmp.lt.s32.totalorder %s30, 1
        %s2298 = scalar_select %p2297, %s30, 1
        %s2299 = smul.addr %s2298, 8
        %s2300 = scalar_lea.vmem %s17, %s2299
      $region108: #{hourglass2d_forward.1} parent=95 // pred_fallthru
        _
    $region96: #{hourglass2d_forward.1} parent=5 // pred_fallthru
      _
  $region6: #{hourglass2d_forward.1} parent=0 // loop_footer
    %s28 = sadd.s32 1, %s24
  $region7: #{hourglass2d_forward.1} parent=0 // loop_footer_branch
    %23 = sbr.rel target = $region3
  $region8: #{hourglass2d_forward.1} parent=0 // loop_exit
    _

</llo_original>
